<compile_context>
chip_gen: v7x
topology: tpu7x:2x2x1
jax: 0.10.0
libtpu: 0.0.40
codegen_flags: <defaults>
</compile_context>

<pallas_src>
import functools

import jax
import jax.numpy as jnp
from jax import lax
from jax.experimental import pallas as pl
from jax.experimental.pallas import tpu as pltpu


def _round_up(x: int, m: int) -> int:
    return ((x + m - 1) // m) * m


def _pick_batch_tile(batch: int, desired: int = 128) -> int:
    """Multiple of 8, up to `desired`, keeping >= 2 grid steps when possible
    (v7x has 2 TensorCores; a 1-step grid serializes onto one core)."""
    bp8 = _round_up(batch, 8)
    tb = min(desired, bp8)
    if bp8 // tb < 2 and bp8 >= 16:
        tb = max(8, _round_up(bp8 // 2, 8))
    return tb


def fasttext_kernel(ids_ref, table_ref, w1_ref, b1_ref, w2_ref, b2_ref,
                    out_ref, *, seq_len: int):
    """One batch tile.

    ids_ref:   [TB, S]    int32 token ids
    table_ref: [Vp, Ep]   bf16 embedding table, pre-scaled by 1/seq_len
    w1_ref:    [Ep, Hp]   bf16;   b1_ref: [1, Hp] f32
    w2_ref:    [Hp, Cp]   bf16;   b2_ref: [1, Cp] f32
    out_ref:   [TB, Cp]   f32 logits (valid columns are [:, :C])
    """
    tb = ids_ref.shape[0]
    vp = table_ref.shape[0]
    iota_v = lax.broadcasted_iota(jnp.int32, (tb, vp), 1)      # [TB, Vp]

    # Per-row token-count histogram, accumulated in int32 (exact; a single
    # convert after the loop instead of S bool->f32 converts).
    if seq_len <= 32:
        ids = ids_ref[...]                                     # [TB, S]
        counts = jnp.zeros((tb, vp), jnp.int32)
        for s in range(seq_len):                               # short static unroll
            counts = counts + (ids[:, s:s + 1] == iota_v).astype(jnp.int32)
    else:
        def body(s, c):
            tok = ids_ref[:, pl.ds(s, 1)]                      # [TB, 1]
            return c + (tok == iota_v).astype(jnp.int32)
        counts = lax.fori_loop(0, seq_len, body,
                               jnp.zeros((tb, vp), jnp.int32), unroll=8)

    # Table is pre-scaled by 1/seq_len on the host, so counts @ table IS the
    # sequence mean.  All matmuls: single-pass bf16 MXU, f32 accumulation.
    pooled = jnp.dot(counts.astype(table_ref.dtype), table_ref[...],
                     preferred_element_type=jnp.float32)       # [TB, Ep] f32

    # dropout (eval mode) == identity

    h = jnp.dot(pooled.astype(w1_ref.dtype), w1_ref[...],
                preferred_element_type=jnp.float32)            # [TB, Hp] f32
    h = jnp.maximum(h + b1_ref[...], 0.0)

    # dropout (eval mode) == identity

    logits = jnp.dot(h.astype(w2_ref.dtype), w2_ref[...],
                     preferred_element_type=jnp.float32)       # [TB, Cp] f32
    out_ref[...] = (logits + b2_ref[...]).astype(out_ref.dtype)


def prepare_fasttext_params(embedding_table, w1, b1, w2, b2, *, seq_len,
                            param_dtype=jnp.bfloat16):
    """One-time host-side prep: pad vocab/embed/hidden/class dims to 128,
    fold the 1/seq_len mean scale into the table, cast matmul operands to
    bf16 (counts are small integers -> exact in bf16)."""
    V, E = embedding_table.shape
    H = w1.shape[1]
    C = w2.shape[1]
    Vp = _round_up(V, 128)
    Ep = _round_up(E, 128)
    Hp = _round_up(H, 128)
    Cp = _round_up(C, 128)

    table_p = jnp.zeros((Vp, Ep), param_dtype).at[:V, :E].set(
        (embedding_table * (1.0 / seq_len)).astype(param_dtype))
    w1_p = jnp.zeros((Ep, Hp), param_dtype).at[:E, :H].set(
        w1.astype(param_dtype))
    b1_p = jnp.zeros((1, Hp), jnp.float32).at[:, :H].set(
        b1.reshape(1, H).astype(jnp.float32))
    w2_p = jnp.zeros((Hp, Cp), param_dtype).at[:H, :C].set(
        w2.astype(param_dtype))
    b2_p = jnp.zeros((1, Cp), jnp.float32).at[:, :C].set(
        b2.reshape(1, C).astype(jnp.float32))
    return dict(table=table_p, w1=w1_p, b1=b1_p, w2=w2_p, b2=b2_p,
                num_classes=C, seq_len=seq_len)


def fasttext_forward(input_ids, params, *, batch_tile=None):
    """input_ids: [B, S] int. Returns logits [B, C] (f32). Out-of-range ids
    (>= vocab_size) contribute zero instead of erroring like torch."""
    B, S = input_ids.shape
    assert S == params["seq_len"], "params were prepared for a different seq_len"
    table_p, w1_p, b1_p = params["table"], params["w1"], params["b1"]
    w2_p, b2_p = params["w2"], params["b2"]
    C = params["num_classes"]
    Vp, Ep = table_p.shape
    Hp = w1_p.shape[1]
    Cp = w2_p.shape[1]

    TB = batch_tile if batch_tile is not None else _pick_batch_tile(B)
    Bp = _round_up(max(B, TB), TB)
    ids_p = input_ids.astype(jnp.int32)
    if Bp != B:
        ids_p = jnp.zeros((Bp, S), jnp.int32).at[:B].set(ids_p)

    grid = (Bp // TB,)
    kernel = functools.partial(fasttext_kernel, seq_len=S)

    # Advisory cost + explicit VMEM budget (v5e scoped default ~16 MiB,
    # v7x 32 MiB scoped / 64 MiB physical).
    w_item = jnp.dtype(table_p.dtype).itemsize
    weight_bytes = (Vp * Ep + Ep * Hp + Hp * Cp) * w_item + (Hp + Cp) * 4
    flops = 2 * Bp * (Vp * Ep + Ep * Hp + Hp * Cp)
    bytes_accessed = int(Bp * S * 4 + weight_bytes + Bp * Cp * 4)
    vmem_est = (2 * (TB * S * 4 + TB * Cp * 4)       # ids/out tiles (double-buf)
                + 2 * weight_bytes                   # worst case: double-buffered consts
                + 3 * TB * Vp * 4                    # counts / iota / compare temps
                + 4 * TB * max(Ep, Hp, Cp) * 4)      # pooled / h / logits temps
    vmem_limit = int(min(48 << 20, max(32 << 20, 2 * vmem_est)))

    out_spec = pl.BlockSpec((TB, Cp), lambda i: (i, 0))

    def run(single_buffer_consts):
        kw = ({"pipeline_mode": pl.Buffered(1)} if single_buffer_consts else {})
        in_specs = [
            pl.BlockSpec((TB, S), lambda i: (i, 0)),          # ids: batch-tiled
            pl.BlockSpec((Vp, Ep), lambda i: (0, 0), **kw),   # table: resident
            pl.BlockSpec((Ep, Hp), lambda i: (0, 0), **kw),   # w1
            pl.BlockSpec((1, Hp), lambda i: (0, 0), **kw),    # b1
            pl.BlockSpec((Hp, Cp), lambda i: (0, 0), **kw),   # w2
            pl.BlockSpec((1, Cp), lambda i: (0, 0), **kw),    # b2
        ]
        return pl.pallas_call(
            kernel,
            out_shape=jax.ShapeDtypeStruct((Bp, Cp), jnp.float32),
            grid_spec=pltpu.PrefetchScalarGridSpec(
                num_scalar_prefetch=0,
                grid=grid,
                in_specs=in_specs,
                out_specs=out_spec),
            compiler_params=pltpu.CompilerParams(
                dimension_semantics=("parallel",),
                vmem_limit_bytes=vmem_limit),
            cost_estimate=pl.CostEstimate(
                flops=flops, transcendentals=0,
                bytes_accessed=bytes_accessed),
        )(ids_p, table_p, w1_p, b1_p, w2_p, b2_p)

    try:
        # Constant-index blocks don't need double-buffering: Buffered(1) halves
        # the resident-table VMEM footprint (matters most on v7x's 64 MiB VMEM).
        out = run(True)
    except Exception:
        out = run(False)   # safe fallback: default double-buffered constants

    return out[:B, :C]


if __name__ == "__main__":
    # Small, module-consistent shapes (batch chosen so the auto batch-tile
    # heuristic yields a multi-step, pipelined grid).
    vocab_size = 100
    embed_dim = 128
    hidden_size = 128
    num_classes = 8
    batch = 16
    seq_len = 16

    key = jax.random.PRNGKey(0)
    k_emb, k_w1, k_b1, k_w2, k_b2, k_ids = jax.random.split(key, 6)

    embedding_table = jax.random.normal(
        k_emb, (vocab_size, embed_dim), jnp.float32) * 0.02
    # nn.Linear stores weight [out, in]; we use the pre-transposed [in, out].
    w1 = jax.random.normal(k_w1, (embed_dim, hidden_size), jnp.float32) * 0.05
    b1 = jax.random.normal(k_b1, (hidden_size,), jnp.float32) * 0.01
    w2 = jax.random.normal(k_w2, (hidden_size, num_classes), jnp.float32) * 0.05
    b2 = jax.random.normal(k_b2, (num_classes,), jnp.float32) * 0.01

    input_ids = jax.random.randint(k_ids, (batch, seq_len), 0, vocab_size,
                                   dtype=jnp.int32)

    params = prepare_fasttext_params(embedding_table, w1, b1, w2, b2,
                                     seq_len=seq_len)
    logits = fasttext_forward(input_ids, params)
    jax.block_until_ready(logits)

    # Pure-JAX f32 reference (gather + mean + MLP) at highest precision; the
    # kernel uses single-pass bf16 MXU matmuls, so allow bf16-level error.
    pooled_ref = jnp.take(embedding_table, input_ids, axis=0).mean(axis=1)
    h_ref = jnp.maximum(
        jnp.dot(pooled_ref, w1, precision=jax.lax.Precision.HIGHEST) + b1, 0.0)
    ref = jnp.dot(h_ref, w2, precision=jax.lax.Precision.HIGHEST) + b2

    assert logits.shape == (batch, num_classes)
    max_err = jnp.max(jnp.abs(logits - ref))
    assert jnp.allclose(logits, ref, atol=1e-3, rtol=1e-2), (
        f"mismatch vs reference, max abs err = {max_err}")

    print("KERNEL_OK")
</pallas_src>

<mosaic_0001>
module attributes {stable_mosaic.version = 11 : i64} {
  func.func @fasttext_kernel(%arg0: i32, %arg1: memref<8x16xi32, #tpu.memory_space<vmem>>, %arg2: memref<128x128xbf16, #tpu.memory_space<vmem>>, %arg3: memref<128x128xbf16, #tpu.memory_space<vmem>>, %arg4: memref<1x128xf32, #tpu.memory_space<vmem>>, %arg5: memref<128x128xbf16, #tpu.memory_space<vmem>>, %arg6: memref<1x128xf32, #tpu.memory_space<vmem>>, %arg7: memref<8x128xf32, #tpu.memory_space<vmem>>) attributes {dimension_semantics = [#tpu.dimension_semantics<parallel>], iteration_bounds = array<i64: 2>, scalar_prefetch = 0 : i64, scratch_operands = 0 : i64, tpu.core_type = #tpu.core_type<tc>, window_params = [{transform_indices = @transform_0, window_bounds = array<i64: 8, 16>}, {pipeline_mode = #tpu.pipeline_mode<synchronous>, transform_indices = @transform_1, window_bounds = array<i64: 128, 128>}, {pipeline_mode = #tpu.pipeline_mode<synchronous>, transform_indices = @transform_2, window_bounds = array<i64: 128, 128>}, {pipeline_mode = #tpu.pipeline_mode<synchronous>, transform_indices = @transform_3, window_bounds = array<i64: 1, 128>}, {pipeline_mode = #tpu.pipeline_mode<synchronous>, transform_indices = @transform_4, window_bounds = array<i64: 128, 128>}, {pipeline_mode = #tpu.pipeline_mode<synchronous>, transform_indices = @transform_5, window_bounds = array<i64: 1, 128>}, {transform_indices = @transform_6, window_bounds = array<i64: 8, 128>}]} {
    %0 = tpu.iota {dimensions = array<i32: 1>} : vector<8x128xi32>
    %c0 = arith.constant 0 : index
    %c0_0 = arith.constant 0 : index
    %1 = vector.load %arg1[%c0, %c0_0] : memref<8x16xi32, #tpu.memory_space<vmem>>, vector<8x16xi32>
    %c0_i32 = arith.constant 0 : i32
    %2 = vector.broadcast %c0_i32 : i32 to vector<8x128xi32>
    %3 = vector.extract_strided_slice %1 {offsets = [0, 0], sizes = [8, 1], strides = [1, 1]} : vector<8x16xi32> to vector<8x1xi32>
    %4 = vector.broadcast %3 : vector<8x1xi32> to vector<8x128xi32>
    %5 = arith.cmpi eq, %4, %0 : vector<8x128xi32>
    %6 = arith.extui %5 : vector<8x128xi1> to vector<8x128xi32>
    %7 = arith.addi %2, %6 : vector<8x128xi32>
    %8 = vector.extract_strided_slice %1 {offsets = [0, 1], sizes = [8, 1], strides = [1, 1]} : vector<8x16xi32> to vector<8x1xi32>
    %9 = vector.broadcast %8 : vector<8x1xi32> to vector<8x128xi32>
    %10 = arith.cmpi eq, %9, %0 : vector<8x128xi32>
    %11 = arith.extui %10 : vector<8x128xi1> to vector<8x128xi32>
    %12 = arith.addi %7, %11 : vector<8x128xi32>
    %13 = vector.extract_strided_slice %1 {offsets = [0, 2], sizes = [8, 1], strides = [1, 1]} : vector<8x16xi32> to vector<8x1xi32>
    %14 = vector.broadcast %13 : vector<8x1xi32> to vector<8x128xi32>
    %15 = arith.cmpi eq, %14, %0 : vector<8x128xi32>
    %16 = arith.extui %15 : vector<8x128xi1> to vector<8x128xi32>
    %17 = arith.addi %12, %16 : vector<8x128xi32>
    %18 = vector.extract_strided_slice %1 {offsets = [0, 3], sizes = [8, 1], strides = [1, 1]} : vector<8x16xi32> to vector<8x1xi32>
    %19 = vector.broadcast %18 : vector<8x1xi32> to vector<8x128xi32>
    %20 = arith.cmpi eq, %19, %0 : vector<8x128xi32>
    %21 = arith.extui %20 : vector<8x128xi1> to vector<8x128xi32>
    %22 = arith.addi %17, %21 : vector<8x128xi32>
    %23 = vector.extract_strided_slice %1 {offsets = [0, 4], sizes = [8, 1], strides = [1, 1]} : vector<8x16xi32> to vector<8x1xi32>
    %24 = vector.broadcast %23 : vector<8x1xi32> to vector<8x128xi32>
    %25 = arith.cmpi eq, %24, %0 : vector<8x128xi32>
    %26 = arith.extui %25 : vector<8x128xi1> to vector<8x128xi32>
    %27 = arith.addi %22, %26 : vector<8x128xi32>
    %28 = vector.extract_strided_slice %1 {offsets = [0, 5], sizes = [8, 1], strides = [1, 1]} : vector<8x16xi32> to vector<8x1xi32>
    %29 = vector.broadcast %28 : vector<8x1xi32> to vector<8x128xi32>
    %30 = arith.cmpi eq, %29, %0 : vector<8x128xi32>
    %31 = arith.extui %30 : vector<8x128xi1> to vector<8x128xi32>
    %32 = arith.addi %27, %31 : vector<8x128xi32>
    %33 = vector.extract_strided_slice %1 {offsets = [0, 6], sizes = [8, 1], strides = [1, 1]} : vector<8x16xi32> to vector<8x1xi32>
    %34 = vector.broadcast %33 : vector<8x1xi32> to vector<8x128xi32>
    %35 = arith.cmpi eq, %34, %0 : vector<8x128xi32>
    %36 = arith.extui %35 : vector<8x128xi1> to vector<8x128xi32>
    %37 = arith.addi %32, %36 : vector<8x128xi32>
    %38 = vector.extract_strided_slice %1 {offsets = [0, 7], sizes = [8, 1], strides = [1, 1]} : vector<8x16xi32> to vector<8x1xi32>
    %39 = vector.broadcast %38 : vector<8x1xi32> to vector<8x128xi32>
    %40 = arith.cmpi eq, %39, %0 : vector<8x128xi32>
    %41 = arith.extui %40 : vector<8x128xi1> to vector<8x128xi32>
    %42 = arith.addi %37, %41 : vector<8x128xi32>
    %43 = vector.extract_strided_slice %1 {offsets = [0, 8], sizes = [8, 1], strides = [1, 1]} : vector<8x16xi32> to vector<8x1xi32>
    %44 = vector.broadcast %43 : vector<8x1xi32> to vector<8x128xi32>
    %45 = arith.cmpi eq, %44, %0 : vector<8x128xi32>
    %46 = arith.extui %45 : vector<8x128xi1> to vector<8x128xi32>
    %47 = arith.addi %42, %46 : vector<8x128xi32>
    %48 = vector.extract_strided_slice %1 {offsets = [0, 9], sizes = [8, 1], strides = [1, 1]} : vector<8x16xi32> to vector<8x1xi32>
    %49 = vector.broadcast %48 : vector<8x1xi32> to vector<8x128xi32>
    %50 = arith.cmpi eq, %49, %0 : vector<8x128xi32>
    %51 = arith.extui %50 : vector<8x128xi1> to vector<8x128xi32>
    %52 = arith.addi %47, %51 : vector<8x128xi32>
    %53 = vector.extract_strided_slice %1 {offsets = [0, 10], sizes = [8, 1], strides = [1, 1]} : vector<8x16xi32> to vector<8x1xi32>
    %54 = vector.broadcast %53 : vector<8x1xi32> to vector<8x128xi32>
    %55 = arith.cmpi eq, %54, %0 : vector<8x128xi32>
    %56 = arith.extui %55 : vector<8x128xi1> to vector<8x128xi32>
    %57 = arith.addi %52, %56 : vector<8x128xi32>
    %58 = vector.extract_strided_slice %1 {offsets = [0, 11], sizes = [8, 1], strides = [1, 1]} : vector<8x16xi32> to vector<8x1xi32>
    %59 = vector.broadcast %58 : vector<8x1xi32> to vector<8x128xi32>
    %60 = arith.cmpi eq, %59, %0 : vector<8x128xi32>
    %61 = arith.extui %60 : vector<8x128xi1> to vector<8x128xi32>
    %62 = arith.addi %57, %61 : vector<8x128xi32>
    %63 = vector.extract_strided_slice %1 {offsets = [0, 12], sizes = [8, 1], strides = [1, 1]} : vector<8x16xi32> to vector<8x1xi32>
    %64 = vector.broadcast %63 : vector<8x1xi32> to vector<8x128xi32>
    %65 = arith.cmpi eq, %64, %0 : vector<8x128xi32>
    %66 = arith.extui %65 : vector<8x128xi1> to vector<8x128xi32>
    %67 = arith.addi %62, %66 : vector<8x128xi32>
    %68 = vector.extract_strided_slice %1 {offsets = [0, 13], sizes = [8, 1], strides = [1, 1]} : vector<8x16xi32> to vector<8x1xi32>
    %69 = vector.broadcast %68 : vector<8x1xi32> to vector<8x128xi32>
    %70 = arith.cmpi eq, %69, %0 : vector<8x128xi32>
    %71 = arith.extui %70 : vector<8x128xi1> to vector<8x128xi32>
    %72 = arith.addi %67, %71 : vector<8x128xi32>
    %73 = vector.extract_strided_slice %1 {offsets = [0, 14], sizes = [8, 1], strides = [1, 1]} : vector<8x16xi32> to vector<8x1xi32>
    %74 = vector.broadcast %73 : vector<8x1xi32> to vector<8x128xi32>
    %75 = arith.cmpi eq, %74, %0 : vector<8x128xi32>
    %76 = arith.extui %75 : vector<8x128xi1> to vector<8x128xi32>
    %77 = arith.addi %72, %76 : vector<8x128xi32>
    %78 = vector.extract_strided_slice %1 {offsets = [0, 15], sizes = [8, 1], strides = [1, 1]} : vector<8x16xi32> to vector<8x1xi32>
    %79 = vector.broadcast %78 : vector<8x1xi32> to vector<8x128xi32>
    %80 = arith.cmpi eq, %79, %0 : vector<8x128xi32>
    %81 = arith.extui %80 : vector<8x128xi1> to vector<8x128xi32>
    %82 = arith.addi %77, %81 : vector<8x128xi32>
    %83 = arith.sitofp %82 : vector<8x128xi32> to vector<8x128xbf16>
    %c0_1 = arith.constant 0 : index
    %c0_2 = arith.constant 0 : index
    %84 = vector.load %arg2[%c0_1, %c0_2] : memref<128x128xbf16, #tpu.memory_space<vmem>>, vector<128x128xbf16>
    %cst = arith.constant dense<0.000000e+00> : vector<8x128xf32>
    %85 = tpu.matmul %83, %84, %cst {dimension_numbers = #tpu.dot_dimension_numbers<[1], [0], [0], [1], [0, 0, 1, 1], [], []>} : vector<8x128xbf16>, vector<128x128xbf16>, vector<8x128xf32> -> vector<8x128xf32>
    %86 = arith.truncf %85 : vector<8x128xf32> to vector<8x128xbf16>
    %c0_3 = arith.constant 0 : index
    %c0_4 = arith.constant 0 : index
    %87 = vector.load %arg3[%c0_3, %c0_4] : memref<128x128xbf16, #tpu.memory_space<vmem>>, vector<128x128xbf16>
    %cst_5 = arith.constant dense<0.000000e+00> : vector<8x128xf32>
    %88 = tpu.matmul %86, %87, %cst_5 {dimension_numbers = #tpu.dot_dimension_numbers<[1], [0], [0], [1], [0, 0, 1, 1], [], []>} : vector<8x128xbf16>, vector<128x128xbf16>, vector<8x128xf32> -> vector<8x128xf32>
    %c0_6 = arith.constant 0 : index
    %c0_7 = arith.constant 0 : index
    %89 = vector.load %arg4[%c0_6, %c0_7] : memref<1x128xf32, #tpu.memory_space<vmem>>, vector<1x128xf32>
    %90 = vector.broadcast %89 : vector<1x128xf32> to vector<8x128xf32>
    %91 = arith.addf %88, %90 : vector<8x128xf32>
    %cst_8 = arith.constant 0.000000e+00 : f32
    %92 = vector.broadcast %cst_8 : f32 to vector<8x128xf32>
    %93 = arith.maximumf %91, %92 : vector<8x128xf32>
    %94 = arith.truncf %93 : vector<8x128xf32> to vector<8x128xbf16>
    %c0_9 = arith.constant 0 : index
    %c0_10 = arith.constant 0 : index
    %95 = vector.load %arg5[%c0_9, %c0_10] : memref<128x128xbf16, #tpu.memory_space<vmem>>, vector<128x128xbf16>
    %cst_11 = arith.constant dense<0.000000e+00> : vector<8x128xf32>
    %96 = tpu.matmul %94, %95, %cst_11 {dimension_numbers = #tpu.dot_dimension_numbers<[1], [0], [0], [1], [0, 0, 1, 1], [], []>} : vector<8x128xbf16>, vector<128x128xbf16>, vector<8x128xf32> -> vector<8x128xf32>
    %c0_12 = arith.constant 0 : index
    %c0_13 = arith.constant 0 : index
    %97 = vector.load %arg6[%c0_12, %c0_13] : memref<1x128xf32, #tpu.memory_space<vmem>>, vector<1x128xf32>
    %98 = vector.broadcast %97 : vector<1x128xf32> to vector<8x128xf32>
    %99 = arith.addf %96, %98 : vector<8x128xf32>
    %c0_14 = arith.constant 0 : index
    %c0_15 = arith.constant 0 : index
    %100 = vector.load %arg7[%c0_14, %c0_15] : memref<8x128xf32, #tpu.memory_space<vmem>>, vector<8x128xf32>
    tpu.vector_store %arg7[%c0_14, %c0_15], %99 {strides = array<i32>} : memref<8x128xf32, #tpu.memory_space<vmem>>, vector<8x128xf32>,
    return
  }
  func.func @transform_0(%arg0: i32) -> (i32, i32) {
    %c0_i32 = arith.constant 0 : i32
    %c0_i32_0 = arith.constant 0 : i32
    return %arg0, %c0_i32 : i32, i32
  }
  func.func @transform_1(%arg0: i32) -> (i32, i32) {
    %c0_i32 = arith.constant 0 : i32
    %c0_i32_0 = arith.constant 0 : i32
    %c0_i32_1 = arith.constant 0 : i32
    return %c0_i32, %c0_i32_0 : i32, i32
  }
  func.func @transform_2(%arg0: i32) -> (i32, i32) {
    %c0_i32 = arith.constant 0 : i32
    %c0_i32_0 = arith.constant 0 : i32
    %c0_i32_1 = arith.constant 0 : i32
    return %c0_i32, %c0_i32_0 : i32, i32
  }
  func.func @transform_3(%arg0: i32) -> (i32, i32) {
    %c0_i32 = arith.constant 0 : i32
    %c0_i32_0 = arith.constant 0 : i32
    %c0_i32_1 = arith.constant 0 : i32
    return %c0_i32, %c0_i32_0 : i32, i32
  }
  func.func @transform_4(%arg0: i32) -> (i32, i32) {
    %c0_i32 = arith.constant 0 : i32
    %c0_i32_0 = arith.constant 0 : i32
    %c0_i32_1 = arith.constant 0 : i32
    return %c0_i32, %c0_i32_0 : i32, i32
  }
  func.func @transform_5(%arg0: i32) -> (i32, i32) {
    %c0_i32 = arith.constant 0 : i32
    %c0_i32_0 = arith.constant 0 : i32
    %c0_i32_1 = arith.constant 0 : i32
    return %c0_i32, %c0_i32_0 : i32, i32
  }
  func.func @transform_6(%arg0: i32) -> (i32, i32) {
    %c0_i32 = arith.constant 0 : i32
    %c0_i32_0 = arith.constant 0 : i32
    return %arg0, %c0_i32 : i32, i32
  }
}

module attributes {stable_mosaic.version = 11 : i64} {
  func.func @fasttext_kernel(%arg0: i32, %arg1: memref<8x16xi32, #tpu.memory_space<vmem>>, %arg2: memref<128x128xbf16, #tpu.memory_space<vmem>>, %arg3: memref<128x128xbf16, #tpu.memory_space<vmem>>, %arg4: memref<1x128xf32, #tpu.memory_space<vmem>>, %arg5: memref<128x128xbf16, #tpu.memory_space<vmem>>, %arg6: memref<1x128xf32, #tpu.memory_space<vmem>>, %arg7: memref<8x128xf32, #tpu.memory_space<vmem>>) attributes {dimension_semantics = [#tpu.dimension_semantics<parallel>], iteration_bounds = array<i64: 2>, scalar_prefetch = 0 : i64, scratch_operands = 0 : i64, tpu.core_type = #tpu.core_type<tc>, window_params = [{transform_indices = @transform_0, window_bounds = array<i64: 8, 16>}, {pipeline_mode = #tpu.pipeline_mode<synchronous>, transform_indices = @transform_1, window_bounds = array<i64: 128, 128>}, {pipeline_mode = #tpu.pipeline_mode<synchronous>, transform_indices = @transform_2, window_bounds = array<i64: 128, 128>}, {pipeline_mode = #tpu.pipeline_mode<synchronous>, transform_indices = @transform_3, window_bounds = array<i64: 1, 128>}, {pipeline_mode = #tpu.pipeline_mode<synchronous>, transform_indices = @transform_4, window_bounds = array<i64: 128, 128>}, {pipeline_mode = #tpu.pipeline_mode<synchronous>, transform_indices = @transform_5, window_bounds = array<i64: 1, 128>}, {transform_indices = @transform_6, window_bounds = array<i64: 8, 128>}]} {
    %0 = tpu.iota {dimensions = array<i32: 1>} : vector<8x128xi32>
    %c0 = arith.constant 0 : index
    %c0_0 = arith.constant 0 : index
    %1 = vector.load %arg1[%c0, %c0_0] : memref<8x16xi32, #tpu.memory_space<vmem>>, vector<8x16xi32>
    %c0_i32 = arith.constant 0 : i32
    %2 = vector.broadcast %c0_i32 : i32 to vector<8x128xi32>
    %3 = vector.extract_strided_slice %1 {offsets = [0, 0], sizes = [8, 1], strides = [1, 1]} : vector<8x16xi32> to vector<8x1xi32>
    %4 = vector.broadcast %3 : vector<8x1xi32> to vector<8x128xi32>
    %5 = arith.cmpi eq, %4, %0 : vector<8x128xi32>
    %6 = arith.extui %5 : vector<8x128xi1> to vector<8x128xi32>
    %7 = arith.addi %2, %6 : vector<8x128xi32>
    %8 = vector.extract_strided_slice %1 {offsets = [0, 1], sizes = [8, 1], strides = [1, 1]} : vector<8x16xi32> to vector<8x1xi32>
    %9 = vector.broadcast %8 : vector<8x1xi32> to vector<8x128xi32>
    %10 = arith.cmpi eq, %9, %0 : vector<8x128xi32>
    %11 = arith.extui %10 : vector<8x128xi1> to vector<8x128xi32>
    %12 = arith.addi %7, %11 : vector<8x128xi32>
    %13 = vector.extract_strided_slice %1 {offsets = [0, 2], sizes = [8, 1], strides = [1, 1]} : vector<8x16xi32> to vector<8x1xi32>
    %14 = vector.broadcast %13 : vector<8x1xi32> to vector<8x128xi32>
    %15 = arith.cmpi eq, %14, %0 : vector<8x128xi32>
    %16 = arith.extui %15 : vector<8x128xi1> to vector<8x128xi32>
    %17 = arith.addi %12, %16 : vector<8x128xi32>
    %18 = vector.extract_strided_slice %1 {offsets = [0, 3], sizes = [8, 1], strides = [1, 1]} : vector<8x16xi32> to vector<8x1xi32>
    %19 = vector.broadcast %18 : vector<8x1xi32> to vector<8x128xi32>
    %20 = arith.cmpi eq, %19, %0 : vector<8x128xi32>
    %21 = arith.extui %20 : vector<8x128xi1> to vector<8x128xi32>
    %22 = arith.addi %17, %21 : vector<8x128xi32>
    %23 = vector.extract_strided_slice %1 {offsets = [0, 4], sizes = [8, 1], strides = [1, 1]} : vector<8x16xi32> to vector<8x1xi32>
    %24 = vector.broadcast %23 : vector<8x1xi32> to vector<8x128xi32>
    %25 = arith.cmpi eq, %24, %0 : vector<8x128xi32>
    %26 = arith.extui %25 : vector<8x128xi1> to vector<8x128xi32>
    %27 = arith.addi %22, %26 : vector<8x128xi32>
    %28 = vector.extract_strided_slice %1 {offsets = [0, 5], sizes = [8, 1], strides = [1, 1]} : vector<8x16xi32> to vector<8x1xi32>
    %29 = vector.broadcast %28 : vector<8x1xi32> to vector<8x128xi32>
    %30 = arith.cmpi eq, %29, %0 : vector<8x128xi32>
    %31 = arith.extui %30 : vector<8x128xi1> to vector<8x128xi32>
    %32 = arith.addi %27, %31 : vector<8x128xi32>
    %33 = vector.extract_strided_slice %1 {offsets = [0, 6], sizes = [8, 1], strides = [1, 1]} : vector<8x16xi32> to vector<8x1xi32>
    %34 = vector.broadcast %33 : vector<8x1xi32> to vector<8x128xi32>
    %35 = arith.cmpi eq, %34, %0 : vector<8x128xi32>
    %36 = arith.extui %35 : vector<8x128xi1> to vector<8x128xi32>
    %37 = arith.addi %32, %36 : vector<8x128xi32>
    %38 = vector.extract_strided_slice %1 {offsets = [0, 7], sizes = [8, 1], strides = [1, 1]} : vector<8x16xi32> to vector<8x1xi32>
    %39 = vector.broadcast %38 : vector<8x1xi32> to vector<8x128xi32>
    %40 = arith.cmpi eq, %39, %0 : vector<8x128xi32>
    %41 = arith.extui %40 : vector<8x128xi1> to vector<8x128xi32>
    %42 = arith.addi %37, %41 : vector<8x128xi32>
    %43 = vector.extract_strided_slice %1 {offsets = [0, 8], sizes = [8, 1], strides = [1, 1]} : vector<8x16xi32> to vector<8x1xi32>
    %44 = vector.broadcast %43 : vector<8x1xi32> to vector<8x128xi32>
    %45 = arith.cmpi eq, %44, %0 : vector<8x128xi32>
    %46 = arith.extui %45 : vector<8x128xi1> to vector<8x128xi32>
    %47 = arith.addi %42, %46 : vector<8x128xi32>
    %48 = vector.extract_strided_slice %1 {offsets = [0, 9], sizes = [8, 1], strides = [1, 1]} : vector<8x16xi32> to vector<8x1xi32>
    %49 = vector.broadcast %48 : vector<8x1xi32> to vector<8x128xi32>
    %50 = arith.cmpi eq, %49, %0 : vector<8x128xi32>
    %51 = arith.extui %50 : vector<8x128xi1> to vector<8x128xi32>
    %52 = arith.addi %47, %51 : vector<8x128xi32>
    %53 = vector.extract_strided_slice %1 {offsets = [0, 10], sizes = [8, 1], strides = [1, 1]} : vector<8x16xi32> to vector<8x1xi32>
    %54 = vector.broadcast %53 : vector<8x1xi32> to vector<8x128xi32>
    %55 = arith.cmpi eq, %54, %0 : vector<8x128xi32>
    %56 = arith.extui %55 : vector<8x128xi1> to vector<8x128xi32>
    %57 = arith.addi %52, %56 : vector<8x128xi32>
    %58 = vector.extract_strided_slice %1 {offsets = [0, 11], sizes = [8, 1], strides = [1, 1]} : vector<8x16xi32> to vector<8x1xi32>
    %59 = vector.broadcast %58 : vector<8x1xi32> to vector<8x128xi32>
    %60 = arith.cmpi eq, %59, %0 : vector<8x128xi32>
    %61 = arith.extui %60 : vector<8x128xi1> to vector<8x128xi32>
    %62 = arith.addi %57, %61 : vector<8x128xi32>
    %63 = vector.extract_strided_slice %1 {offsets = [0, 12], sizes = [8, 1], strides = [1, 1]} : vector<8x16xi32> to vector<8x1xi32>
    %64 = vector.broadcast %63 : vector<8x1xi32> to vector<8x128xi32>
    %65 = arith.cmpi eq, %64, %0 : vector<8x128xi32>
    %66 = arith.extui %65 : vector<8x128xi1> to vector<8x128xi32>
    %67 = arith.addi %62, %66 : vector<8x128xi32>
    %68 = vector.extract_strided_slice %1 {offsets = [0, 13], sizes = [8, 1], strides = [1, 1]} : vector<8x16xi32> to vector<8x1xi32>
    %69 = vector.broadcast %68 : vector<8x1xi32> to vector<8x128xi32>
    %70 = arith.cmpi eq, %69, %0 : vector<8x128xi32>
    %71 = arith.extui %70 : vector<8x128xi1> to vector<8x128xi32>
    %72 = arith.addi %67, %71 : vector<8x128xi32>
    %73 = vector.extract_strided_slice %1 {offsets = [0, 14], sizes = [8, 1], strides = [1, 1]} : vector<8x16xi32> to vector<8x1xi32>
    %74 = vector.broadcast %73 : vector<8x1xi32> to vector<8x128xi32>
    %75 = arith.cmpi eq, %74, %0 : vector<8x128xi32>
    %76 = arith.extui %75 : vector<8x128xi1> to vector<8x128xi32>
    %77 = arith.addi %72, %76 : vector<8x128xi32>
    %78 = vector.extract_strided_slice %1 {offsets = [0, 15], sizes = [8, 1], strides = [1, 1]} : vector<8x16xi32> to vector<8x1xi32>
    %79 = vector.broadcast %78 : vector<8x1xi32> to vector<8x128xi32>
    %80 = arith.cmpi eq, %79, %0 : vector<8x128xi32>
    %81 = arith.extui %80 : vector<8x128xi1> to vector<8x128xi32>
    %82 = arith.addi %77, %81 : vector<8x128xi32>
    %83 = arith.sitofp %82 : vector<8x128xi32> to vector<8x128xbf16>
    %c0_1 = arith.constant 0 : index
    %c0_2 = arith.constant 0 : index
    %84 = vector.load %arg2[%c0_1, %c0_2] : memref<128x128xbf16, #tpu.memory_space<vmem>>, vector<128x128xbf16>
    %cst = arith.constant dense<0.000000e+00> : vector<8x128xf32>
    %85 = tpu.matmul %83, %84, %cst {dimension_numbers = #tpu.dot_dimension_numbers<[1], [0], [0], [1], [0, 0, 1, 1], [], []>} : vector<8x128xbf16>, vector<128x128xbf16>, vector<8x128xf32> -> vector<8x128xf32>
    %86 = arith.truncf %85 : vector<8x128xf32> to vector<8x128xbf16>
    %c0_3 = arith.constant 0 : index
    %c0_4 = arith.constant 0 : index
    %87 = vector.load %arg3[%c0_3, %c0_4] : memref<128x128xbf16, #tpu.memory_space<vmem>>, vector<128x128xbf16>
    %cst_5 = arith.constant dense<0.000000e+00> : vector<8x128xf32>
    %88 = tpu.matmul %86, %87, %cst_5 {dimension_numbers = #tpu.dot_dimension_numbers<[1], [0], [0], [1], [0, 0, 1, 1], [], []>} : vector<8x128xbf16>, vector<128x128xbf16>, vector<8x128xf32> -> vector<8x128xf32>
    %c0_6 = arith.constant 0 : index
    %c0_7 = arith.constant 0 : index
    %89 = vector.load %arg4[%c0_6, %c0_7] : memref<1x128xf32, #tpu.memory_space<vmem>>, vector<1x128xf32>
    %90 = vector.broadcast %89 : vector<1x128xf32> to vector<8x128xf32>
    %91 = arith.addf %88, %90 : vector<8x128xf32>
    %cst_8 = arith.constant 0.000000e+00 : f32
    %92 = vector.broadcast %cst_8 : f32 to vector<8x128xf32>
    %93 = arith.maximumf %91, %92 : vector<8x128xf32>
    %94 = arith.truncf %93 : vector<8x128xf32> to vector<8x128xbf16>
    %c0_9 = arith.constant 0 : index
    %c0_10 = arith.constant 0 : index
    %95 = vector.load %arg5[%c0_9, %c0_10] : memref<128x128xbf16, #tpu.memory_space<vmem>>, vector<128x128xbf16>
    %cst_11 = arith.constant dense<0.000000e+00> : vector<8x128xf32>
    %96 = tpu.matmul %94, %95, %cst_11 {dimension_numbers = #tpu.dot_dimension_numbers<[1], [0], [0], [1], [0, 0, 1, 1], [], []>} : vector<8x128xbf16>, vector<128x128xbf16>, vector<8x128xf32> -> vector<8x128xf32>
    %c0_12 = arith.constant 0 : index
    %c0_13 = arith.constant 0 : index
    %97 = vector.load %arg6[%c0_12, %c0_13] : memref<1x128xf32, #tpu.memory_space<vmem>>, vector<1x128xf32>
    %98 = vector.broadcast %97 : vector<1x128xf32> to vector<8x128xf32>
    %99 = arith.addf %96, %98 : vector<8x128xf32>
    %c0_14 = arith.constant 0 : index
    %c0_15 = arith.constant 0 : index
    %100 = vector.load %arg7[%c0_14, %c0_15] : memref<8x128xf32, #tpu.memory_space<vmem>>, vector<8x128xf32>
    tpu.vector_store %arg7[%c0_14, %c0_15], %99 {strides = array<i32>} : memref<8x128xf32, #tpu.memory_space<vmem>>, vector<8x128xf32>,
    return
  }
  func.func @transform_0(%arg0: i32) -> (i32, i32) {
    %c0_i32 = arith.constant 0 : i32
    %c0_i32_0 = arith.constant 0 : i32
    return %arg0, %c0_i32 : i32, i32
  }
  func.func @transform_1(%arg0: i32) -> (i32, i32) {
    %c0_i32 = arith.constant 0 : i32
    %c0_i32_0 = arith.constant 0 : i32
    %c0_i32_1 = arith.constant 0 : i32
    return %c0_i32, %c0_i32_0 : i32, i32
  }
  func.func @transform_2(%arg0: i32) -> (i32, i32) {
    %c0_i32 = arith.constant 0 : i32
    %c0_i32_0 = arith.constant 0 : i32
    %c0_i32_1 = arith.constant 0 : i32
    return %c0_i32, %c0_i32_0 : i32, i32
  }
  func.func @transform_3(%arg0: i32) -> (i32, i32) {
    %c0_i32 = arith.constant 0 : i32
    %c0_i32_0 = arith.constant 0 : i32
    %c0_i32_1 = arith.constant 0 : i32
    return %c0_i32, %c0_i32_0 : i32, i32
  }
  func.func @transform_4(%arg0: i32) -> (i32, i32) {
    %c0_i32 = arith.constant 0 : i32
    %c0_i32_0 = arith.constant 0 : i32
    %c0_i32_1 = arith.constant 0 : i32
    return %c0_i32, %c0_i32_0 : i32, i32
  }
  func.func @transform_5(%arg0: i32) -> (i32, i32) {
    %c0_i32 = arith.constant 0 : i32
    %c0_i32_0 = arith.constant 0 : i32
    %c0_i32_1 = arith.constant 0 : i32
    return %c0_i32, %c0_i32_0 : i32, i32
  }
  func.func @transform_6(%arg0: i32) -> (i32, i32) {
    %c0_i32 = arith.constant 0 : i32
    %c0_i32_0 = arith.constant 0 : i32
    return %arg0, %c0_i32 : i32, i32
  }
}

</mosaic_0001>

<llo_original>
// kernel: tpu_custom_call.1
$region0: #{tpu_custom_call.1}
  #allocation0 [shape = 'u32[]', space=smem, size = 0x4, offset = 0x4, fixed_abs, tag = 'smem constant byte address 0x4 - core index']
  #allocation1 [shape = 'u32[144,128]{1,0:T(1,128)}', space=vmem, size = 0x12000, scoped, tag = 'internal scratch']
  %s0 = inlined_call_operand.hbm [shape: s32[16,16], index: 0, kind: input, shape index: {}]
  %s1 = inlined_call_operand.hbm [shape: bf16[128,128], index: 1, kind: input, shape index: {}]
  %s2 = inlined_call_operand.hbm [shape: bf16[128,128], index: 2, kind: input, shape index: {}]
  %s3 = inlined_call_operand.vmem [shape: f32[1,128], index: 3, kind: input, shape index: {}]
  %s4 = inlined_call_operand.hbm [shape: bf16[128,128], index: 4, kind: input, shape index: {}]
  %s5 = inlined_call_operand.vmem [shape: f32[1,128], index: 5, kind: input, shape index: {}]
  %s6 = inlined_call_operand.hbm [shape: f32[16,128], index: 6, kind: output, shape index: {}]
  %s7 = sld [smem:[#allocation0]]
  $region73: #{tpu_custom_call.1} parent=0
    _
  %s9 = ssub.s32 1, %s7
  %s10 = scalar_select 0, %s9, %s7
  $region1: #{tpu_custom_call.1} parent=0
    #allocation2 [shape = 'u8[8192]{0}', space=vmem, size = 0x2000, scoped, tag = 'input window, operand 0']
    #allocation3 [shape = 's32[2]{0}', space=sflag, size = 0x8, scoped, tag = 'scoped memory for tpu_custom_call.1']
    #allocation4 [shape = 's32[2]{0}', space=sflag, size = 0x8, scoped, tag = 'scoped memory for tpu_custom_call.1']
    #allocation5 [shape = 'u8[32768]{0}', space=vmem, size = 0x8000, scoped, tag = 'input window, operand 1, single buffered']
    #allocation6 [shape = 's32[1]{0}', space=sflag, size = 0x4, scoped, tag = 'scoped memory for tpu_custom_call.1']
    #allocation7 [shape = 'u8[32768]{0}', space=vmem, size = 0x8000, scoped, tag = 'input window, operand 2, single buffered']
    #allocation8 [shape = 'u8[32768]{0}', space=vmem, size = 0x8000, scoped, tag = 'input window, operand 4, single buffered']
    #allocation9 [shape = 's32[1]{0}', space=sflag, size = 0x4, scoped, tag = 'scoped memory for tpu_custom_call.1']
    #allocation10 [shape = 'u8[8192]{0}', space=vmem, size = 0x2000, scoped, tag = 'output window, operand 0']
    %11 = vsyncpa [#allocation3], 0
    %s12 = scalar_lea.sflag [#allocation3], 1
    %13 = vsyncpa %s12, 0
    %14 = vsyncpa [#allocation6], 0
    %15 = vsyncpa [#allocation9], 0
    %16 = vsyncpa [#allocation4], 0
    %s17 = scalar_lea.sflag [#allocation4], 1
    %18 = vsyncpa %s17, 0
    loop: start=0, step=1, limit=4
    $region2: #{tpu_custom_call.1} parent=1 // loop_pre_header
      _
    $region3: #{tpu_custom_call.1} parent=1 // loop_header
      %s20 = sphi 0, %s24
      %p21 = scmp.ge.s32.totalorder %s20, 4
      %s30 = sphi 0, %s32
      %s33 = sphi 0, %s30
      %s34 = sphi 0, %s33
      %s50 = sphi 0, %s34
      %s54 = sphi 0, %s54
      %s56 = sphi 0, %s54
      %s57 = sphi 0, %s56
      %s71 = sphi 0, %s57
      %s75 = sphi 0, %s75
      %s77 = sphi 0, %s75
      %s78 = sphi 0, %s77
      %s92 = sphi 0, %s78
      %s96 = sphi 0, %s96
      %s98 = sphi 0, %s96
      %s99 = sphi 0, %s98
      %s113 = sphi 0, %s99
      %s117 = sphi 0, %s117
      %s119 = sphi 0, %s117
      %s120 = sphi 0, %s119
      %s134 = sphi 0, %s120
      %s138 = sphi 0, %s138
      %s140 = sphi 0, %s138
      %s141 = sphi 0, %s140
      %s155 = sphi 0, %s141
      %s161 = sphi 0, %s163
      %s164 = sphi 0, %s161
      %s165 = sphi 0, %s164
      %s181 = sphi 0, %s165
    $region4: #{tpu_custom_call.1} parent=1 // loop_header_branch
      %23 = sbr.rel (%p21) target = $region8
    $region5: #{tpu_custom_call.1} parent=1 // loop_body
      %s25 = ssub.s32 %s20, 1
      %s26 = ssub.s32 %s20, 2
      %s27 = sadd.s32 %s20, 1
      %s28 = ssub.s32 %s20, %s27
      %p29 = scmp.eq.s32.totalorder %s28, 0
      %s31 = sadd.s32 %s30, 1
      %s32 = scalar_select %p29, %s30, %s31
      %p35 = pneg %p29
      %p36 = scmp.eq.s32.totalorder %s20, 1
      %p37 = por %p35, %p36
      %p38 = scmp.ne.s32.totalorder %s30, %s33
      %p39 = scmp.eq.s32.totalorder %s20, 0
      %p40 = por %p38, %p39
      %p41 = scmp.ne.s32.totalorder %s30, %s33
      %p42 = scmp.eq.s32.totalorder %s25, 1
      %p43 = por %p41, %p42
      %p44 = scmp.ne.s32.totalorder %s33, %s34
      %p45 = scmp.eq.s32.totalorder %s25, 0
      %p46 = por %p44, %p45
      %p47 = scmp.ne.s32.totalorder %s33, %s34
      %p48 = scmp.eq.s32.totalorder %s26, 1
      %p49 = por %p47, %p48
      %p51 = scmp.ne.s32.totalorder %s34, %s50
      %p52 = scmp.eq.s32.totalorder %s26, 0
      %p53 = por %p51, %p52
      %s55 = sadd.s32 %s54, 1
      %p58 = scmp.eq.s32.totalorder %s20, 1
      %p59 = scmp.ne.s32.totalorder %s54, %s56
      %p60 = scmp.eq.s32.totalorder %s20, 0
      %p61 = por %p59, %p60
      %p62 = scmp.ne.s32.totalorder %s54, %s56
      %p63 = scmp.eq.s32.totalorder %s25, 1
      %p64 = por %p62, %p63
      %p65 = scmp.ne.s32.totalorder %s56, %s57
      %p66 = scmp.eq.s32.totalorder %s25, 0
      %p67 = por %p65, %p66
      %p68 = scmp.ne.s32.totalorder %s56, %s57
      %p69 = scmp.eq.s32.totalorder %s26, 1
      %p70 = por %p68, %p69
      %p72 = scmp.ne.s32.totalorder %s57, %s71
      %p73 = scmp.eq.s32.totalorder %s26, 0
      %p74 = por %p72, %p73
      %s76 = sadd.s32 %s75, 1
      %p79 = scmp.eq.s32.totalorder %s20, 1
      %p80 = scmp.ne.s32.totalorder %s75, %s77
      %p81 = scmp.eq.s32.totalorder %s20, 0
      %p82 = por %p80, %p81
      %p83 = scmp.ne.s32.totalorder %s75, %s77
      %p84 = scmp.eq.s32.totalorder %s25, 1
      %p85 = por %p83, %p84
      %p86 = scmp.ne.s32.totalorder %s77, %s78
      %p87 = scmp.eq.s32.totalorder %s25, 0
      %p88 = por %p86, %p87
      %p89 = scmp.ne.s32.totalorder %s77, %s78
      %p90 = scmp.eq.s32.totalorder %s26, 1
      %p91 = por %p89, %p90
      %p93 = scmp.ne.s32.totalorder %s78, %s92
      %p94 = scmp.eq.s32.totalorder %s26, 0
      %p95 = por %p93, %p94
      %s97 = sadd.s32 %s96, 1
      %p100 = scmp.eq.s32.totalorder %s20, 1
      %p101 = scmp.ne.s32.totalorder %s96, %s98
      %p102 = scmp.eq.s32.totalorder %s20, 0
      %p103 = por %p101, %p102
      %p104 = scmp.ne.s32.totalorder %s96, %s98
      %p105 = scmp.eq.s32.totalorder %s25, 1
      %p106 = por %p104, %p105
      %p107 = scmp.ne.s32.totalorder %s98, %s99
      %p108 = scmp.eq.s32.totalorder %s25, 0
      %p109 = por %p107, %p108
      %p110 = scmp.ne.s32.totalorder %s98, %s99
      %p111 = scmp.eq.s32.totalorder %s26, 1
      %p112 = por %p110, %p111
      %p114 = scmp.ne.s32.totalorder %s99, %s113
      %p115 = scmp.eq.s32.totalorder %s26, 0
      %p116 = por %p114, %p115
      %s118 = sadd.s32 %s117, 1
      %p121 = scmp.eq.s32.totalorder %s20, 1
      %p122 = scmp.ne.s32.totalorder %s117, %s119
      %p123 = scmp.eq.s32.totalorder %s20, 0
      %p124 = por %p122, %p123
      %p125 = scmp.ne.s32.totalorder %s117, %s119
      %p126 = scmp.eq.s32.totalorder %s25, 1
      %p127 = por %p125, %p126
      %p128 = scmp.ne.s32.totalorder %s119, %s120
      %p129 = scmp.eq.s32.totalorder %s25, 0
      %p130 = por %p128, %p129
      %p131 = scmp.ne.s32.totalorder %s119, %s120
      %p132 = scmp.eq.s32.totalorder %s26, 1
      %p133 = por %p131, %p132
      %p135 = scmp.ne.s32.totalorder %s120, %s134
      %p136 = scmp.eq.s32.totalorder %s26, 0
      %p137 = por %p135, %p136
      %s139 = sadd.s32 %s138, 1
      %p142 = scmp.eq.s32.totalorder %s20, 1
      %p143 = scmp.ne.s32.totalorder %s138, %s140
      %p144 = scmp.eq.s32.totalorder %s20, 0
      %p145 = por %p143, %p144
      %p146 = scmp.ne.s32.totalorder %s138, %s140
      %p147 = scmp.eq.s32.totalorder %s25, 1
      %p148 = por %p146, %p147
      %p149 = scmp.ne.s32.totalorder %s140, %s141
      %p150 = scmp.eq.s32.totalorder %s25, 0
      %p151 = por %p149, %p150
      %p152 = scmp.ne.s32.totalorder %s140, %s141
      %p153 = scmp.eq.s32.totalorder %s26, 1
      %p154 = por %p152, %p153
      %p156 = scmp.ne.s32.totalorder %s141, %s155
      %p157 = scmp.eq.s32.totalorder %s26, 0
      %p158 = por %p156, %p157
      %s159 = ssub.s32 %s20, %s27
      %p160 = scmp.eq.s32.totalorder %s159, 0
      %s162 = sadd.s32 %s161, 1
      %s163 = scalar_select %p160, %s161, %s162
      %p166 = pneg %p160
      %p167 = scmp.eq.s32.totalorder %s20, 1
      %p168 = por %p166, %p167
      %p169 = scmp.ne.s32.totalorder %s161, %s164
      %p170 = scmp.eq.s32.totalorder %s20, 0
      %p171 = por %p169, %p170
      %p172 = scmp.ne.s32.totalorder %s161, %s164
      %p173 = scmp.eq.s32.totalorder %s25, 1
      %p174 = por %p172, %p173
      %p175 = scmp.ne.s32.totalorder %s164, %s165
      %p176 = scmp.eq.s32.totalorder %s25, 0
      %p177 = por %p175, %p176
      %p178 = scmp.ne.s32.totalorder %s164, %s165
      %p179 = scmp.eq.s32.totalorder %s26, 1
      %p180 = por %p178, %p179
      %p182 = scmp.ne.s32.totalorder %s165, %s181
      %p183 = scmp.eq.s32.totalorder %s26, 0
      %p184 = por %p182, %p183
      %p185 = scmp.le.s32.totalorder 1, %s20
      %p186 = scmp.lt.s32.totalorder %s20, 3
      %p187 = pnand %p185, %p186
      %p188 = pneg %p187
      // Predicated region
      $region9: #{tpu_custom_call.1} parent=5 // pred_check
        _
      $region10: #{tpu_custom_call.1} parent=5 // pred_check_branch
        %190 = sbr.rel (%p187) target = $region12
      $region11: #{tpu_custom_call.1} parent=5 // pred_region
        %s191 = ssub.s32 %s20, 1
        // Predicated region
        $region13: #{tpu_custom_call.1} parent=11 // pred_check
          %p192 = pneg %p67
        $region14: #{tpu_custom_call.1} parent=11 // pred_check_branch
          %194 = sbr.rel (%p192) target = $region16
        $region15: #{tpu_custom_call.1} parent=11 // pred_region
          %s196 = ssub.s32 1024, 1024
          %197 = vsyncadd [#allocation6], %s196
          %s198 = sshll.u32 [#allocation5], 4
          %s199 = int_to_ptr.vmem [resolvable:$true] %s198
          %204 = dma.hbm_to_vmem [thread:$0]  %s1, 1024, %s199, [#allocation6], 64, 64, 4
        $region16: #{tpu_custom_call.1} parent=11 // pred_fallthru
          _
        // Predicated region
        $region17: #{tpu_custom_call.1} parent=11 // pred_check
          %p205 = pneg %p88
        $region18: #{tpu_custom_call.1} parent=11 // pred_check_branch
          %207 = sbr.rel (%p205) target = $region20
        $region19: #{tpu_custom_call.1} parent=11 // pred_region
          %s209 = ssub.s32 1024, 1024
          %210 = vsyncadd [#allocation6], %s209
          %s211 = sshll.u32 [#allocation7], 4
          %s212 = int_to_ptr.vmem [resolvable:$true] %s211
          %217 = dma.hbm_to_vmem [thread:$0]  %s2, 1024, %s212, [#allocation6], 64, 64, 4
        $region20: #{tpu_custom_call.1} parent=11 // pred_fallthru
          _
        // Predicated region
        $region21: #{tpu_custom_call.1} parent=11 // pred_check
          %p218 = pneg %p109
        $region22: #{tpu_custom_call.1} parent=11 // pred_check_branch
          %220 = sbr.rel (%p218) target = $region24
        $region23: #{tpu_custom_call.1} parent=11 // pred_region
          _
        $region24: #{tpu_custom_call.1} parent=11 // pred_fallthru
          _
        // Predicated region
        $region25: #{tpu_custom_call.1} parent=11 // pred_check
          %p221 = pneg %p130
        $region26: #{tpu_custom_call.1} parent=11 // pred_check_branch
          %223 = sbr.rel (%p221) target = $region28
        $region27: #{tpu_custom_call.1} parent=11 // pred_region
          %s225 = ssub.s32 1024, 1024
          %226 = vsyncadd [#allocation9], %s225
          %s227 = sshll.u32 [#allocation8], 4
          %s228 = int_to_ptr.vmem [resolvable:$true] %s227
          %233 = dma.hbm_to_vmem [thread:$0]  %s4, 1024, %s228, [#allocation9], 64, 64, 4
        $region28: #{tpu_custom_call.1} parent=11 // pred_fallthru
          _
        // Predicated region
        $region29: #{tpu_custom_call.1} parent=11 // pred_check
          %p234 = pneg %p151
        $region30: #{tpu_custom_call.1} parent=11 // pred_check_branch
          %236 = sbr.rel (%p234) target = $region32
        $region31: #{tpu_custom_call.1} parent=11 // pred_region
          _
        $region32: #{tpu_custom_call.1} parent=11 // pred_fallthru
          _
      $region12: #{tpu_custom_call.1} parent=5 // pred_fallthru
        _
      %p237 = scmp.lt.s32.totalorder %s20, 2
      // Predicated region
      $region33: #{tpu_custom_call.1} parent=5 // pred_check
        %p238 = pneg %p237
      $region34: #{tpu_custom_call.1} parent=5 // pred_check_branch
        %240 = sbr.rel (%p238) target = $region36
      $region35: #{tpu_custom_call.1} parent=5 // pred_region
        // Predicated region
        $region37: #{tpu_custom_call.1} parent=35 // pred_check
          %p241 = pneg %p40
        $region38: #{tpu_custom_call.1} parent=35 // pred_check_branch
          %243 = sbr.rel (%p241) target = $region40
        $region39: #{tpu_custom_call.1} parent=35 // pred_region
          %s244 = sand.u32 %s30, 1
          %s245 = scalar_lea.sflag [#allocation3], %s244
          %s246 = sand.u32 %s30, 1
          %s247 = smul.addr %s246, 8
          %s248 = scalar_lea.vmem [#allocation2], %s247
          %s250 = ssub.s32 128, 128
          %251 = vsyncadd %s245, %s250
          %s252 = smul.addr %s20, 128
          %s253 = scalar_lea.hbm %s0, %s252
          %s255 = sshll.u32 %s248, 4
          %s256 = int_to_ptr.vmem [resolvable:$true] %s255
          %258 = dma.hbm_to_vmem [thread:$0]  %s253, 128, %s256, %s245
        $region40: #{tpu_custom_call.1} parent=35 // pred_fallthru
          _
      $region36: #{tpu_custom_call.1} parent=5 // pred_fallthru
        _
      %p259 = scmp.le.s32.totalorder 1, %s20
      %p260 = scmp.lt.s32.totalorder %s20, 3
      %p261 = pnand %p259, %p260
      %p262 = pneg %p261
      // Predicated region
      $region41: #{tpu_custom_call.1} parent=5 // pred_check
        _
      $region42: #{tpu_custom_call.1} parent=5 // pred_check_branch
        %264 = sbr.rel (%p261) target = $region44
      $region43: #{tpu_custom_call.1} parent=5 // pred_region
        %s265 = ssub.s32 %s20, 1
        %s266 = sand.u32 %s33, 1
        %s267 = scalar_lea.sflag [#allocation3], %s266
        %s268 = sand.u32 %s33, 1
        %s269 = smul.addr %s268, 8
        %s270 = scalar_lea.vmem [#allocation2], %s269
        // Predicated region
        $region45: #{tpu_custom_call.1} parent=43 // pred_check
          %p271 = pneg %p46
        $region46: #{tpu_custom_call.1} parent=43 // pred_check_branch
          %273 = sbr.rel (%p271) target = $region48
        $region47: #{tpu_custom_call.1} parent=43 // pred_region
          %274 = dma.done %s267, 128
        $region48: #{tpu_custom_call.1} parent=43 // pred_fallthru
          _
        // Predicated region
        $region49: #{tpu_custom_call.1} parent=43 // pred_check
          %p275 = pneg %p67
        $region50: #{tpu_custom_call.1} parent=43 // pred_check_branch
          %277 = sbr.rel (%p275) target = $region52
        $region51: #{tpu_custom_call.1} parent=43 // pred_region
          %278 = dma.done [#allocation6], 1024
        $region52: #{tpu_custom_call.1} parent=43 // pred_fallthru
          _
        // Predicated region
        $region53: #{tpu_custom_call.1} parent=43 // pred_check
          %p279 = pneg %p88
        $region54: #{tpu_custom_call.1} parent=43 // pred_check_branch
          %281 = sbr.rel (%p279) target = $region56
        $region55: #{tpu_custom_call.1} parent=43 // pred_region
          %282 = dma.done [#allocation6], 1024
        $region56: #{tpu_custom_call.1} parent=43 // pred_fallthru
          _
        // Predicated region
        $region57: #{tpu_custom_call.1} parent=43 // pred_check
          %p283 = pneg %p130
        $region58: #{tpu_custom_call.1} parent=43 // pred_check_branch
          %285 = sbr.rel (%p283) target = $region60
        $region59: #{tpu_custom_call.1} parent=43 // pred_region
          %286 = dma.done [#allocation9], 1024
        $region60: #{tpu_custom_call.1} parent=43 // pred_fallthru
          _
        %s287 = sand.u32 %s33, 1
        %s288 = scalar_lea.sflag [#allocation3], %s287
        %s289 = sand.u32 %s33, 1
        %s290 = smul.addr %s289, 8
        %s291 = scalar_lea.vmem [#allocation2], %s290
        %p292 = pneg %p46
        %p293 = pneg %p43
        %p294 = pneg %p67
        %p295 = pneg %p64
        %p296 = pneg %p88
        %p297 = pneg %p85
        %p298 = pneg %p109
        %p299 = pneg %p106
        %p300 = pneg %p130
        %p301 = pneg %p127
        %p302 = pneg %p151
        %p303 = pneg %p148
        %p304 = pneg %p177
        %p305 = pneg %p174
        %s306 = sand.u32 %s164, 1
        %s307 = scalar_lea.sflag [#allocation4], %s306
        %s308 = sand.u32 %s164, 1
        %s309 = smul.addr %s308, 8
        %s310 = scalar_lea.vmem [#allocation10], %s309
        %v312 = vlaneseq
        %v313 = vand.u32 %v312, 127
        %v314 = vld [vmem:[%s270] sm:$0xff]
        %315 = vset.pattern.permute.xlu0 0
        %316 = vperm.xlu0 %315, %v314
        %v317 = vpop.permute.xlu0 %316
        %vm318 = vcmp.eq.s32.totalorder %v317, %v313
        %v319 = vsel %vm318, 1, 0
        %320 = vset.pattern.permute.xlu0 1
        %321 = vperm.xlu0 %320, %v314
        %v322 = vpop.permute.xlu0 %321
        %vm323 = vcmp.eq.s32.totalorder %v322, %v313
        %v324 = vsel %vm323, 1, 0
        %v325 = vadd.s32 %v319, %v324
        %326 = vset.pattern.permute.xlu0 2
        %327 = vperm.xlu0 %326, %v314
        %v328 = vpop.permute.xlu0 %327
        %vm329 = vcmp.eq.s32.totalorder %v328, %v313
        %v330 = vsel %vm329, 1, 0
        %v331 = vadd.s32 %v325, %v330
        %332 = vset.pattern.permute.xlu0 3
        %333 = vperm.xlu0 %332, %v314
        %v334 = vpop.permute.xlu0 %333
        %vm335 = vcmp.eq.s32.totalorder %v334, %v313
        %v336 = vsel %vm335, 1, 0
        %v337 = vadd.s32 %v331, %v336
        %338 = vset.pattern.permute.xlu0 4
        %339 = vperm.xlu0 %338, %v314
        %v340 = vpop.permute.xlu0 %339
        %vm341 = vcmp.eq.s32.totalorder %v340, %v313
        %v342 = vsel %vm341, 1, 0
        %v343 = vadd.s32 %v337, %v342
        %344 = vset.pattern.permute.xlu0 5
        %345 = vperm.xlu0 %344, %v314
        %v346 = vpop.permute.xlu0 %345
        %vm347 = vcmp.eq.s32.totalorder %v346, %v313
        %v348 = vsel %vm347, 1, 0
        %v349 = vadd.s32 %v343, %v348
        %350 = vset.pattern.permute.xlu0 6
        %351 = vperm.xlu0 %350, %v314
        %v352 = vpop.permute.xlu0 %351
        %vm353 = vcmp.eq.s32.totalorder %v352, %v313
        %v354 = vsel %vm353, 1, 0
        %v355 = vadd.s32 %v349, %v354
        %356 = vset.pattern.permute.xlu0 7
        %357 = vperm.xlu0 %356, %v314
        %v358 = vpop.permute.xlu0 %357
        %vm359 = vcmp.eq.s32.totalorder %v358, %v313
        %v360 = vsel %vm359, 1, 0
        %v361 = vadd.s32 %v355, %v360
        %362 = vset.pattern.permute.xlu0 8
        %363 = vperm.xlu0 %362, %v314
        %v364 = vpop.permute.xlu0 %363
        %vm365 = vcmp.eq.s32.totalorder %v364, %v313
        %v366 = vsel %vm365, 1, 0
        %v367 = vadd.s32 %v361, %v366
        %368 = vset.pattern.permute.xlu0 9
        %369 = vperm.xlu0 %368, %v314
        %v370 = vpop.permute.xlu0 %369
        %vm371 = vcmp.eq.s32.totalorder %v370, %v313
        %v372 = vsel %vm371, 1, 0
        %v373 = vadd.s32 %v367, %v372
        %374 = vset.pattern.permute.xlu0 10
        %375 = vperm.xlu0 %374, %v314
        %v376 = vpop.permute.xlu0 %375
        %vm377 = vcmp.eq.s32.totalorder %v376, %v313
        %v378 = vsel %vm377, 1, 0
        %v379 = vadd.s32 %v373, %v378
        %380 = vset.pattern.permute.xlu0 11
        %381 = vperm.xlu0 %380, %v314
        %v382 = vpop.permute.xlu0 %381
        %vm383 = vcmp.eq.s32.totalorder %v382, %v313
        %v384 = vsel %vm383, 1, 0
        %v385 = vadd.s32 %v379, %v384
        %386 = vset.pattern.permute.xlu0 12
        %387 = vperm.xlu0 %386, %v314
        %v388 = vpop.permute.xlu0 %387
        %vm389 = vcmp.eq.s32.totalorder %v388, %v313
        %v390 = vsel %vm389, 1, 0
        %v391 = vadd.s32 %v385, %v390
        %392 = vset.pattern.permute.xlu0 13
        %393 = vperm.xlu0 %392, %v314
        %v394 = vpop.permute.xlu0 %393
        %vm395 = vcmp.eq.s32.totalorder %v394, %v313
        %v396 = vsel %vm395, 1, 0
        %v397 = vadd.s32 %v391, %v396
        %398 = vset.pattern.permute.xlu0 14
        %399 = vperm.xlu0 %398, %v314
        %v400 = vpop.permute.xlu0 %399
        %vm401 = vcmp.eq.s32.totalorder %v400, %v313
        %v402 = vsel %vm401, 1, 0
        %v403 = vadd.s32 %v397, %v402
        %404 = vset.pattern.permute.xlu0 15
        %405 = vperm.xlu0 %404, %v314
        %v406 = vpop.permute.xlu0 %405
        %vm407 = vcmp.eq.s32.totalorder %v406, %v313
        %v408 = vsel %vm407, 1, 0
        %v409 = vadd.s32 %v403, %v408
        %v410 = vcvt.s32.f32 %v409
        %v411 = vpack.c.bf16 %v410, %v410
        %v412 = vld [vmem:[#allocation5] sm:$0xf]
        %v413 = vld [vmem:[#allocation5 + $0x4] sm:$0xf]
        %v414 = vld [vmem:[#allocation5 + $0x8] sm:$0xf]
        %v415 = vld [vmem:[#allocation5 + $0xc] sm:$0xf]
        %v416 = vld [vmem:[#allocation5 + $0x10] sm:$0xf]
        %v417 = vld [vmem:[#allocation5 + $0x14] sm:$0xf]
        %v418 = vld [vmem:[#allocation5 + $0x18] sm:$0xf]
        %v419 = vld [vmem:[#allocation5 + $0x1c] sm:$0xf]
        %v420 = vld [vmem:[#allocation5 + $0x20] sm:$0xf]
        %v421 = vld [vmem:[#allocation5 + $0x24] sm:$0xf]
        %v422 = vld [vmem:[#allocation5 + $0x28] sm:$0xf]
        %v423 = vld [vmem:[#allocation5 + $0x2c] sm:$0xf]
        %v424 = vld [vmem:[#allocation5 + $0x30] sm:$0xf]
        %v425 = vld [vmem:[#allocation5 + $0x34] sm:$0xf]
        %v426 = vld [vmem:[#allocation5 + $0x38] sm:$0xf]
        %v427 = vld [vmem:[#allocation5 + $0x3c] sm:$0xf]
        %v444 = vunpack.c.l.b16 %v412
        %v445 = vunpack.c.l.b16 %v413
        %v446 = vunpack.c.l.b16 %v414
        %v447 = vunpack.c.l.b16 %v415
        %v448 = vunpack.c.l.b16 %v416
        %v449 = vunpack.c.l.b16 %v417
        %v450 = vunpack.c.l.b16 %v418
        %v451 = vunpack.c.l.b16 %v419
        %v452 = vunpack.c.l.b16 %v420
        %v453 = vunpack.c.l.b16 %v421
        %v454 = vunpack.c.l.b16 %v422
        %v455 = vunpack.c.l.b16 %v423
        %v456 = vunpack.c.l.b16 %v424
        %v457 = vunpack.c.l.b16 %v425
        %v458 = vunpack.c.l.b16 %v426
        %v459 = vunpack.c.l.b16 %v427
        %v460 = vpack.c.b16 %v445, %v444
        %v461 = vpack.c.b16 %v447, %v446
        %v462 = vpack.c.b16 %v449, %v448
        %v463 = vpack.c.b16 %v451, %v450
        %v464 = vpack.c.b16 %v453, %v452
        %v465 = vpack.c.b16 %v455, %v454
        %v466 = vpack.c.b16 %v457, %v456
        %v467 = vpack.c.b16 %v459, %v458
        %476 = vmatprep.subr.bf16.mxu0 0
        %477 = vmatpush1.bf16.msra.mxu0 %v460
        %478 = vmatprep.subr.bf16.mxu0 0
        %479 = vmatpush1.bf16.msra.mxu0 %v461
        %480 = vmatprep.subr.bf16.mxu0 0
        %481 = vmatpush1.bf16.msra.mxu0 %v462
        %482 = vmatprep.subr.bf16.mxu0 0
        %483 = vmatpush1.bf16.msra.mxu0 %v463
        %484 = vmatprep.subr.bf16.mxu0 0
        %485 = vmatpush1.bf16.msra.mxu0 %v464
        %486 = vmatprep.subr.bf16.mxu0 0
        %487 = vmatpush1.bf16.msra.mxu0 %v465
        %488 = vmatprep.subr.bf16.mxu0 0
        %489 = vmatpush1.bf16.msra.mxu0 %v466
        %490 = vmatprep.subr.bf16.mxu0 0
        %491 = vmatpush1.bf16.msra.mxu0 %v467
        %492 = vmatprep.subr.bf16.mxu0 0
        %493 = vmatpush1.bf16.msra.mxu0 0
        %494 = vmatprep.subr.bf16.mxu0 0
        %495 = vmatpush1.bf16.msra.mxu0 0
        %496 = vmatprep.subr.bf16.mxu0 0
        %497 = vmatpush1.bf16.msra.mxu0 0
        %498 = vmatprep.subr.bf16.mxu0 0
        %499 = vmatpush1.bf16.msra.mxu0 0
        %500 = vmatprep.subr.bf16.mxu0 0
        %501 = vmatpush1.bf16.msra.mxu0 0
        %502 = vmatprep.subr.bf16.mxu0 0
        %503 = vmatpush1.bf16.msra.mxu0 0
        %504 = vmatprep.subr.bf16.mxu0 0
        %505 = vmatpush1.bf16.msra.mxu0 0
        %506 = vmatprep.subr.bf16.mxu0 0
        %507 = vmatpush1.bf16.msra.mxu0 0
        %508 = vmatprep.mubr.bf16.mxu0 0
        %509 = vmatmul.mubr.bf16.gmra.mrb[0].mxu0 %v411
        %v510 = vpop.f32.mrb[0].mxu0
        %v511 = vadd.f32 0.0, %v510
        %v512 = vpop.f32.mrb[0].mxu0
        %v513 = vpop.f32.mrb[0].mxu0
        %v514 = vpop.f32.mrb[0].mxu0
        %515 = vdwg.mxu0
        %v516 = vpack.c.bf16 %v511, %v511
        %v517 = vld [vmem:[#allocation7] sm:$0xf]
        %v518 = vld [vmem:[#allocation7 + $0x4] sm:$0xf]
        %v519 = vld [vmem:[#allocation7 + $0x8] sm:$0xf]
        %v520 = vld [vmem:[#allocation7 + $0xc] sm:$0xf]
        %v521 = vld [vmem:[#allocation7 + $0x10] sm:$0xf]
        %v522 = vld [vmem:[#allocation7 + $0x14] sm:$0xf]
        %v523 = vld [vmem:[#allocation7 + $0x18] sm:$0xf]
        %v524 = vld [vmem:[#allocation7 + $0x1c] sm:$0xf]
        %v525 = vld [vmem:[#allocation7 + $0x20] sm:$0xf]
        %v526 = vld [vmem:[#allocation7 + $0x24] sm:$0xf]
        %v527 = vld [vmem:[#allocation7 + $0x28] sm:$0xf]
        %v528 = vld [vmem:[#allocation7 + $0x2c] sm:$0xf]
        %v529 = vld [vmem:[#allocation7 + $0x30] sm:$0xf]
        %v530 = vld [vmem:[#allocation7 + $0x34] sm:$0xf]
        %v531 = vld [vmem:[#allocation7 + $0x38] sm:$0xf]
        %v532 = vld [vmem:[#allocation7 + $0x3c] sm:$0xf]
        %v533 = vld [vmem:[%s3] sm:$0x1]
        %v535 = vlaneseq
        %v536 = vshrl.u32 %v535, 7
        %v537 = vsub.s32 0, %v536
        %v538 = vrot.slane %v533, %v537
        %v556 = vunpack.c.l.b16 %v517
        %v557 = vunpack.c.l.b16 %v518
        %v558 = vunpack.c.l.b16 %v519
        %v559 = vunpack.c.l.b16 %v520
        %v560 = vunpack.c.l.b16 %v521
        %v561 = vunpack.c.l.b16 %v522
        %v562 = vunpack.c.l.b16 %v523
        %v563 = vunpack.c.l.b16 %v524
        %v564 = vunpack.c.l.b16 %v525
        %v565 = vunpack.c.l.b16 %v526
        %v566 = vunpack.c.l.b16 %v527
        %v567 = vunpack.c.l.b16 %v528
        %v568 = vunpack.c.l.b16 %v529
        %v569 = vunpack.c.l.b16 %v530
        %v570 = vunpack.c.l.b16 %v531
        %v571 = vunpack.c.l.b16 %v532
        %v572 = vpack.c.b16 %v557, %v556
        %v573 = vpack.c.b16 %v559, %v558
        %v574 = vpack.c.b16 %v561, %v560
        %v575 = vpack.c.b16 %v563, %v562
        %v576 = vpack.c.b16 %v565, %v564
        %v577 = vpack.c.b16 %v567, %v566
        %v578 = vpack.c.b16 %v569, %v568
        %v579 = vpack.c.b16 %v571, %v570
        %588 = vmatprep.subr.bf16.mxu0 0
        %589 = vmatpush1.bf16.msra.mxu0 %v572
        %590 = vmatprep.subr.bf16.mxu0 0
        %591 = vmatpush1.bf16.msra.mxu0 %v573
        %592 = vmatprep.subr.bf16.mxu0 0
        %593 = vmatpush1.bf16.msra.mxu0 %v574
        %594 = vmatprep.subr.bf16.mxu0 0
        %595 = vmatpush1.bf16.msra.mxu0 %v575
        %596 = vmatprep.subr.bf16.mxu0 0
        %597 = vmatpush1.bf16.msra.mxu0 %v576
        %598 = vmatprep.subr.bf16.mxu0 0
        %599 = vmatpush1.bf16.msra.mxu0 %v577
        %600 = vmatprep.subr.bf16.mxu0 0
        %601 = vmatpush1.bf16.msra.mxu0 %v578
        %602 = vmatprep.subr.bf16.mxu0 0
        %603 = vmatpush1.bf16.msra.mxu0 %v579
        %604 = vmatprep.subr.bf16.mxu0 0
        %605 = vmatpush1.bf16.msra.mxu0 0
        %606 = vmatprep.subr.bf16.mxu0 0
        %607 = vmatpush1.bf16.msra.mxu0 0
        %608 = vmatprep.subr.bf16.mxu0 0
        %609 = vmatpush1.bf16.msra.mxu0 0
        %610 = vmatprep.subr.bf16.mxu0 0
        %611 = vmatpush1.bf16.msra.mxu0 0
        %612 = vmatprep.subr.bf16.mxu0 0
        %613 = vmatpush1.bf16.msra.mxu0 0
        %614 = vmatprep.subr.bf16.mxu0 0
        %615 = vmatpush1.bf16.msra.mxu0 0
        %616 = vmatprep.subr.bf16.mxu0 0
        %617 = vmatpush1.bf16.msra.mxu0 0
        %618 = vmatprep.subr.bf16.mxu0 0
        %619 = vmatpush1.bf16.msra.mxu0 0
        %620 = vmatprep.mubr.bf16.mxu0 0
        %621 = vmatmul.mubr.bf16.gmra.mrb[0].mxu0 %v516
        %v622 = vpop.f32.mrb[0].mxu0
        %v623 = vadd.f32 %v538, %v622
        %v624 = vpop.f32.mrb[0].mxu0
        %v625 = vpop.f32.mrb[0].mxu0
        %v626 = vpop.f32.mrb[0].mxu0
        %627 = vdwg.mxu0
        %v628 = vmax.f32 %v623, 0.0
        %v629 = vpack.c.bf16 %v628, %v628
        %v630 = vld [vmem:[#allocation8] sm:$0xf]
        %v631 = vld [vmem:[#allocation8 + $0x4] sm:$0xf]
        %v632 = vld [vmem:[#allocation8 + $0x8] sm:$0xf]
        %v633 = vld [vmem:[#allocation8 + $0xc] sm:$0xf]
        %v634 = vld [vmem:[#allocation8 + $0x10] sm:$0xf]
        %v635 = vld [vmem:[#allocation8 + $0x14] sm:$0xf]
        %v636 = vld [vmem:[#allocation8 + $0x18] sm:$0xf]
        %v637 = vld [vmem:[#allocation8 + $0x1c] sm:$0xf]
        %v638 = vld [vmem:[#allocation8 + $0x20] sm:$0xf]
        %v639 = vld [vmem:[#allocation8 + $0x24] sm:$0xf]
        %v640 = vld [vmem:[#allocation8 + $0x28] sm:$0xf]
        %v641 = vld [vmem:[#allocation8 + $0x2c] sm:$0xf]
        %v642 = vld [vmem:[#allocation8 + $0x30] sm:$0xf]
        %v643 = vld [vmem:[#allocation8 + $0x34] sm:$0xf]
        %v644 = vld [vmem:[#allocation8 + $0x38] sm:$0xf]
        %v645 = vld [vmem:[#allocation8 + $0x3c] sm:$0xf]
        %v646 = vld [vmem:[%s5] sm:$0x1]
        %v648 = vlaneseq
        %v649 = vshrl.u32 %v648, 7
        %v650 = vsub.s32 0, %v649
        %v651 = vrot.slane %v646, %v650
        %v669 = vunpack.c.l.b16 %v630
        %v670 = vunpack.c.l.b16 %v631
        %v671 = vunpack.c.l.b16 %v632
        %v672 = vunpack.c.l.b16 %v633
        %v673 = vunpack.c.l.b16 %v634
        %v674 = vunpack.c.l.b16 %v635
        %v675 = vunpack.c.l.b16 %v636
        %v676 = vunpack.c.l.b16 %v637
        %v677 = vunpack.c.l.b16 %v638
        %v678 = vunpack.c.l.b16 %v639
        %v679 = vunpack.c.l.b16 %v640
        %v680 = vunpack.c.l.b16 %v641
        %v681 = vunpack.c.l.b16 %v642
        %v682 = vunpack.c.l.b16 %v643
        %v683 = vunpack.c.l.b16 %v644
        %v684 = vunpack.c.l.b16 %v645
        %v685 = vpack.c.b16 %v670, %v669
        %v686 = vpack.c.b16 %v672, %v671
        %v687 = vpack.c.b16 %v674, %v673
        %v688 = vpack.c.b16 %v676, %v675
        %v689 = vpack.c.b16 %v678, %v677
        %v690 = vpack.c.b16 %v680, %v679
        %v691 = vpack.c.b16 %v682, %v681
        %v692 = vpack.c.b16 %v684, %v683
        %701 = vmatprep.subr.bf16.mxu0 0
        %702 = vmatpush1.bf16.msra.mxu0 %v685
        %703 = vmatprep.subr.bf16.mxu0 0
        %704 = vmatpush1.bf16.msra.mxu0 %v686
        %705 = vmatprep.subr.bf16.mxu0 0
        %706 = vmatpush1.bf16.msra.mxu0 %v687
        %707 = vmatprep.subr.bf16.mxu0 0
        %708 = vmatpush1.bf16.msra.mxu0 %v688
        %709 = vmatprep.subr.bf16.mxu0 0
        %710 = vmatpush1.bf16.msra.mxu0 %v689
        %711 = vmatprep.subr.bf16.mxu0 0
        %712 = vmatpush1.bf16.msra.mxu0 %v690
        %713 = vmatprep.subr.bf16.mxu0 0
        %714 = vmatpush1.bf16.msra.mxu0 %v691
        %715 = vmatprep.subr.bf16.mxu0 0
        %716 = vmatpush1.bf16.msra.mxu0 %v692
        %717 = vmatprep.subr.bf16.mxu0 0
        %718 = vmatpush1.bf16.msra.mxu0 0
        %719 = vmatprep.subr.bf16.mxu0 0
        %720 = vmatpush1.bf16.msra.mxu0 0
        %721 = vmatprep.subr.bf16.mxu0 0
        %722 = vmatpush1.bf16.msra.mxu0 0
        %723 = vmatprep.subr.bf16.mxu0 0
        %724 = vmatpush1.bf16.msra.mxu0 0
        %725 = vmatprep.subr.bf16.mxu0 0
        %726 = vmatpush1.bf16.msra.mxu0 0
        %727 = vmatprep.subr.bf16.mxu0 0
        %728 = vmatpush1.bf16.msra.mxu0 0
        %729 = vmatprep.subr.bf16.mxu0 0
        %730 = vmatpush1.bf16.msra.mxu0 0
        %731 = vmatprep.subr.bf16.mxu0 0
        %732 = vmatpush1.bf16.msra.mxu0 0
        %733 = vmatprep.mubr.bf16.mxu0 0
        %734 = vmatmul.mubr.bf16.gmra.mrb[0].mxu0 %v629
        %v735 = vpop.f32.mrb[0].mxu0
        %v736 = vadd.f32 %v651, %v735
        %v737 = vpop.f32.mrb[0].mxu0
        %v738 = vpop.f32.mrb[0].mxu0
        %v739 = vpop.f32.mrb[0].mxu0
        %740 = vdwg.mxu0
        %741 = vst [vmem:[%s310] sm:$0xff] %v736
        %s742 = sand.u32 %s164, 1
        %s743 = scalar_lea.sflag [#allocation4], %s742
        %s744 = sand.u32 %s164, 1
        %s745 = smul.addr %s744, 8
        %s746 = scalar_lea.vmem [#allocation10], %s745
        // Predicated region
        $region61: #{tpu_custom_call.1} parent=43 // pred_check
          %p747 = pneg %p174
        $region62: #{tpu_custom_call.1} parent=43 // pred_check_branch
          %749 = sbr.rel (%p747) target = $region64
        $region63: #{tpu_custom_call.1} parent=43 // pred_region
          %s751 = ssub.s32 128, 128
          %752 = vsyncadd %s743, %s751
          %s753 = smul.addr %s25, 128
          %s754 = scalar_lea.hbm %s6, %s753
          %s756 = sshll.u32 %s746, 4
          %s757 = int_to_ptr.vmem [resolvable:$true] %s756
          %759 = dma.vmem_to_hbm [thread:$0]  %s757, 128, %s754, %s743
        $region64: #{tpu_custom_call.1} parent=43 // pred_fallthru
          _
      $region44: #{tpu_custom_call.1} parent=5 // pred_fallthru
        _
      %p760 = scmp.le.s32.totalorder 2, %s20
      // Predicated region
      $region65: #{tpu_custom_call.1} parent=5 // pred_check
        %p761 = pneg %p760
      $region66: #{tpu_custom_call.1} parent=5 // pred_check_branch
        %763 = sbr.rel (%p761) target = $region68
      $region67: #{tpu_custom_call.1} parent=5 // pred_region
        %s764 = ssub.s32 %s20, 2
        // Predicated region
        $region69: #{tpu_custom_call.1} parent=67 // pred_check
          %p765 = pneg %p180
        $region70: #{tpu_custom_call.1} parent=67 // pred_check_branch
          %767 = sbr.rel (%p765) target = $region72
        $region71: #{tpu_custom_call.1} parent=67 // pred_region
          %s768 = sand.u32 %s165, 1
          %s769 = scalar_lea.sflag [#allocation4], %s768
          %s770 = sand.u32 %s165, 1
          %s771 = smul.addr %s770, 8
          %s772 = scalar_lea.vmem [#allocation10], %s771
          %773 = dma.done %s769, 128
        $region72: #{tpu_custom_call.1} parent=67 // pred_fallthru
          _
      $region68: #{tpu_custom_call.1} parent=5 // pred_fallthru
        _
    $region6: #{tpu_custom_call.1} parent=1 // loop_footer
      %s24 = sadd.s32 1, %s20
    $region7: #{tpu_custom_call.1} parent=1 // loop_footer_branch
      %19 = sbr.rel target = $region3
    $region8: #{tpu_custom_call.1} parent=1 // loop_exit
      _
    %774 = vsyncpa [#allocation3], 1
    %s775 = scalar_lea.sflag [#allocation3], 1
    %776 = vsyncpa %s775, 1
    %777 = vsyncpa [#allocation6], 1
    %778 = vsyncpa [#allocation9], 1
    %779 = vsyncpa [#allocation4], 1
    %s780 = scalar_lea.sflag [#allocation4], 1
    %781 = vsyncpa %s780, 1

// kernel: tpu_custom_call.1
$region0: #{tpu_custom_call.1}
  #allocation0 [shape = 'u32[]', space=smem, size = 0x4, offset = 0x4, fixed_abs, tag = 'smem constant byte address 0x4 - core index']
  #allocation1 [shape = 'u32[144,128]{1,0:T(1,128)}', space=vmem, size = 0x12000, scoped, tag = 'internal scratch']
  %s0 = inlined_call_operand.hbm [shape: s32[16,16], index: 0, kind: input, shape index: {}]
  %s1 = inlined_call_operand.hbm [shape: bf16[128,128], index: 1, kind: input, shape index: {}]
  %s2 = inlined_call_operand.hbm [shape: bf16[128,128], index: 2, kind: input, shape index: {}]
  %s3 = inlined_call_operand.vmem [shape: f32[1,128], index: 3, kind: input, shape index: {}]
  %s4 = inlined_call_operand.hbm [shape: bf16[128,128], index: 4, kind: input, shape index: {}]
  %s5 = inlined_call_operand.vmem [shape: f32[1,128], index: 5, kind: input, shape index: {}]
  %s6 = inlined_call_operand.hbm [shape: f32[16,128], index: 6, kind: output, shape index: {}]
  %s7 = sld [smem:[#allocation0]]
  $region73: #{tpu_custom_call.1} parent=0
    _
  %s9 = ssub.s32 1, %s7
  %s10 = scalar_select 0, %s9, %s7
  $region1: #{tpu_custom_call.1} parent=0
    #allocation2 [shape = 'u8[8192]{0}', space=vmem, size = 0x2000, scoped, tag = 'input window, operand 0']
    #allocation3 [shape = 's32[2]{0}', space=sflag, size = 0x8, scoped, tag = 'scoped memory for tpu_custom_call.1']
    #allocation4 [shape = 's32[2]{0}', space=sflag, size = 0x8, scoped, tag = 'scoped memory for tpu_custom_call.1']
    #allocation5 [shape = 'u8[32768]{0}', space=vmem, size = 0x8000, scoped, tag = 'input window, operand 1, single buffered']
    #allocation6 [shape = 's32[1]{0}', space=sflag, size = 0x4, scoped, tag = 'scoped memory for tpu_custom_call.1']
    #allocation7 [shape = 'u8[32768]{0}', space=vmem, size = 0x8000, scoped, tag = 'input window, operand 2, single buffered']
    #allocation8 [shape = 'u8[32768]{0}', space=vmem, size = 0x8000, scoped, tag = 'input window, operand 4, single buffered']
    #allocation9 [shape = 's32[1]{0}', space=sflag, size = 0x4, scoped, tag = 'scoped memory for tpu_custom_call.1']
    #allocation10 [shape = 'u8[8192]{0}', space=vmem, size = 0x2000, scoped, tag = 'output window, operand 0']
    %11 = vsyncpa [#allocation3], 0
    %s12 = scalar_lea.sflag [#allocation3], 1
    %13 = vsyncpa %s12, 0
    %14 = vsyncpa [#allocation6], 0
    %15 = vsyncpa [#allocation9], 0
    %16 = vsyncpa [#allocation4], 0
    %s17 = scalar_lea.sflag [#allocation4], 1
    %18 = vsyncpa %s17, 0
    loop: start=0, step=1, limit=4
    $region2: #{tpu_custom_call.1} parent=1 // loop_pre_header
      _
    $region3: #{tpu_custom_call.1} parent=1 // loop_header
      %s20 = sphi 0, %s24
      %p21 = scmp.ge.s32.totalorder %s20, 4
      %s30 = sphi 0, %s32
      %s33 = sphi 0, %s30
      %s34 = sphi 0, %s33
      %s50 = sphi 0, %s34
      %s54 = sphi 0, %s54
      %s56 = sphi 0, %s54
      %s57 = sphi 0, %s56
      %s71 = sphi 0, %s57
      %s75 = sphi 0, %s75
      %s77 = sphi 0, %s75
      %s78 = sphi 0, %s77
      %s92 = sphi 0, %s78
      %s96 = sphi 0, %s96
      %s98 = sphi 0, %s96
      %s99 = sphi 0, %s98
      %s113 = sphi 0, %s99
      %s117 = sphi 0, %s117
      %s119 = sphi 0, %s117
      %s120 = sphi 0, %s119
      %s134 = sphi 0, %s120
      %s138 = sphi 0, %s138
      %s140 = sphi 0, %s138
      %s141 = sphi 0, %s140
      %s155 = sphi 0, %s141
      %s161 = sphi 0, %s163
      %s164 = sphi 0, %s161
      %s165 = sphi 0, %s164
      %s181 = sphi 0, %s165
    $region4: #{tpu_custom_call.1} parent=1 // loop_header_branch
      %23 = sbr.rel (%p21) target = $region8
    $region5: #{tpu_custom_call.1} parent=1 // loop_body
      %s25 = ssub.s32 %s20, 1
      %s26 = ssub.s32 %s20, 2
      %s27 = sadd.s32 %s20, 1
      %s28 = ssub.s32 %s20, %s27
      %p29 = scmp.eq.s32.totalorder %s28, 0
      %s31 = sadd.s32 %s30, 1
      %s32 = scalar_select %p29, %s30, %s31
      %p35 = pneg %p29
      %p36 = scmp.eq.s32.totalorder %s20, 1
      %p37 = por %p35, %p36
      %p38 = scmp.ne.s32.totalorder %s30, %s33
      %p39 = scmp.eq.s32.totalorder %s20, 0
      %p40 = por %p38, %p39
      %p41 = scmp.ne.s32.totalorder %s30, %s33
      %p42 = scmp.eq.s32.totalorder %s25, 1
      %p43 = por %p41, %p42
      %p44 = scmp.ne.s32.totalorder %s33, %s34
      %p45 = scmp.eq.s32.totalorder %s25, 0
      %p46 = por %p44, %p45
      %p47 = scmp.ne.s32.totalorder %s33, %s34
      %p48 = scmp.eq.s32.totalorder %s26, 1
      %p49 = por %p47, %p48
      %p51 = scmp.ne.s32.totalorder %s34, %s50
      %p52 = scmp.eq.s32.totalorder %s26, 0
      %p53 = por %p51, %p52
      %s55 = sadd.s32 %s54, 1
      %p58 = scmp.eq.s32.totalorder %s20, 1
      %p59 = scmp.ne.s32.totalorder %s54, %s56
      %p60 = scmp.eq.s32.totalorder %s20, 0
      %p61 = por %p59, %p60
      %p62 = scmp.ne.s32.totalorder %s54, %s56
      %p63 = scmp.eq.s32.totalorder %s25, 1
      %p64 = por %p62, %p63
      %p65 = scmp.ne.s32.totalorder %s56, %s57
      %p66 = scmp.eq.s32.totalorder %s25, 0
      %p67 = por %p65, %p66
      %p68 = scmp.ne.s32.totalorder %s56, %s57
      %p69 = scmp.eq.s32.totalorder %s26, 1
      %p70 = por %p68, %p69
      %p72 = scmp.ne.s32.totalorder %s57, %s71
      %p73 = scmp.eq.s32.totalorder %s26, 0
      %p74 = por %p72, %p73
      %s76 = sadd.s32 %s75, 1
      %p79 = scmp.eq.s32.totalorder %s20, 1
      %p80 = scmp.ne.s32.totalorder %s75, %s77
      %p81 = scmp.eq.s32.totalorder %s20, 0
      %p82 = por %p80, %p81
      %p83 = scmp.ne.s32.totalorder %s75, %s77
      %p84 = scmp.eq.s32.totalorder %s25, 1
      %p85 = por %p83, %p84
      %p86 = scmp.ne.s32.totalorder %s77, %s78
      %p87 = scmp.eq.s32.totalorder %s25, 0
      %p88 = por %p86, %p87
      %p89 = scmp.ne.s32.totalorder %s77, %s78
      %p90 = scmp.eq.s32.totalorder %s26, 1
      %p91 = por %p89, %p90
      %p93 = scmp.ne.s32.totalorder %s78, %s92
      %p94 = scmp.eq.s32.totalorder %s26, 0
      %p95 = por %p93, %p94
      %s97 = sadd.s32 %s96, 1
      %p100 = scmp.eq.s32.totalorder %s20, 1
      %p101 = scmp.ne.s32.totalorder %s96, %s98
      %p102 = scmp.eq.s32.totalorder %s20, 0
      %p103 = por %p101, %p102
      %p104 = scmp.ne.s32.totalorder %s96, %s98
      %p105 = scmp.eq.s32.totalorder %s25, 1
      %p106 = por %p104, %p105
      %p107 = scmp.ne.s32.totalorder %s98, %s99
      %p108 = scmp.eq.s32.totalorder %s25, 0
      %p109 = por %p107, %p108
      %p110 = scmp.ne.s32.totalorder %s98, %s99
      %p111 = scmp.eq.s32.totalorder %s26, 1
      %p112 = por %p110, %p111
      %p114 = scmp.ne.s32.totalorder %s99, %s113
      %p115 = scmp.eq.s32.totalorder %s26, 0
      %p116 = por %p114, %p115
      %s118 = sadd.s32 %s117, 1
      %p121 = scmp.eq.s32.totalorder %s20, 1
      %p122 = scmp.ne.s32.totalorder %s117, %s119
      %p123 = scmp.eq.s32.totalorder %s20, 0
      %p124 = por %p122, %p123
      %p125 = scmp.ne.s32.totalorder %s117, %s119
      %p126 = scmp.eq.s32.totalorder %s25, 1
      %p127 = por %p125, %p126
      %p128 = scmp.ne.s32.totalorder %s119, %s120
      %p129 = scmp.eq.s32.totalorder %s25, 0
      %p130 = por %p128, %p129
      %p131 = scmp.ne.s32.totalorder %s119, %s120
      %p132 = scmp.eq.s32.totalorder %s26, 1
      %p133 = por %p131, %p132
      %p135 = scmp.ne.s32.totalorder %s120, %s134
      %p136 = scmp.eq.s32.totalorder %s26, 0
      %p137 = por %p135, %p136
      %s139 = sadd.s32 %s138, 1
      %p142 = scmp.eq.s32.totalorder %s20, 1
      %p143 = scmp.ne.s32.totalorder %s138, %s140
      %p144 = scmp.eq.s32.totalorder %s20, 0
      %p145 = por %p143, %p144
      %p146 = scmp.ne.s32.totalorder %s138, %s140
      %p147 = scmp.eq.s32.totalorder %s25, 1
      %p148 = por %p146, %p147
      %p149 = scmp.ne.s32.totalorder %s140, %s141
      %p150 = scmp.eq.s32.totalorder %s25, 0
      %p151 = por %p149, %p150
      %p152 = scmp.ne.s32.totalorder %s140, %s141
      %p153 = scmp.eq.s32.totalorder %s26, 1
      %p154 = por %p152, %p153
      %p156 = scmp.ne.s32.totalorder %s141, %s155
      %p157 = scmp.eq.s32.totalorder %s26, 0
      %p158 = por %p156, %p157
      %s159 = ssub.s32 %s20, %s27
      %p160 = scmp.eq.s32.totalorder %s159, 0
      %s162 = sadd.s32 %s161, 1
      %s163 = scalar_select %p160, %s161, %s162
      %p166 = pneg %p160
      %p167 = scmp.eq.s32.totalorder %s20, 1
      %p168 = por %p166, %p167
      %p169 = scmp.ne.s32.totalorder %s161, %s164
      %p170 = scmp.eq.s32.totalorder %s20, 0
      %p171 = por %p169, %p170
      %p172 = scmp.ne.s32.totalorder %s161, %s164
      %p173 = scmp.eq.s32.totalorder %s25, 1
      %p174 = por %p172, %p173
      %p175 = scmp.ne.s32.totalorder %s164, %s165
      %p176 = scmp.eq.s32.totalorder %s25, 0
      %p177 = por %p175, %p176
      %p178 = scmp.ne.s32.totalorder %s164, %s165
      %p179 = scmp.eq.s32.totalorder %s26, 1
      %p180 = por %p178, %p179
      %p182 = scmp.ne.s32.totalorder %s165, %s181
      %p183 = scmp.eq.s32.totalorder %s26, 0
      %p184 = por %p182, %p183
      %p185 = scmp.le.s32.totalorder 1, %s20
      %p186 = scmp.lt.s32.totalorder %s20, 3
      %p187 = pnand %p185, %p186
      %p188 = pneg %p187
      // Predicated region
      $region9: #{tpu_custom_call.1} parent=5 // pred_check
        _
      $region10: #{tpu_custom_call.1} parent=5 // pred_check_branch
        %190 = sbr.rel (%p187) target = $region12
      $region11: #{tpu_custom_call.1} parent=5 // pred_region
        %s191 = ssub.s32 %s20, 1
        // Predicated region
        $region13: #{tpu_custom_call.1} parent=11 // pred_check
          %p192 = pneg %p67
        $region14: #{tpu_custom_call.1} parent=11 // pred_check_branch
          %194 = sbr.rel (%p192) target = $region16
        $region15: #{tpu_custom_call.1} parent=11 // pred_region
          %s196 = ssub.s32 1024, 1024
          %197 = vsyncadd [#allocation6], %s196
          %s198 = sshll.u32 [#allocation5], 4
          %s199 = int_to_ptr.vmem [resolvable:$true] %s198
          %204 = dma.hbm_to_vmem [thread:$0]  %s1, 1024, %s199, [#allocation6], 64, 64, 4
        $region16: #{tpu_custom_call.1} parent=11 // pred_fallthru
          _
        // Predicated region
        $region17: #{tpu_custom_call.1} parent=11 // pred_check
          %p205 = pneg %p88
        $region18: #{tpu_custom_call.1} parent=11 // pred_check_branch
          %207 = sbr.rel (%p205) target = $region20
        $region19: #{tpu_custom_call.1} parent=11 // pred_region
          %s209 = ssub.s32 1024, 1024
          %210 = vsyncadd [#allocation6], %s209
          %s211 = sshll.u32 [#allocation7], 4
          %s212 = int_to_ptr.vmem [resolvable:$true] %s211
          %217 = dma.hbm_to_vmem [thread:$0]  %s2, 1024, %s212, [#allocation6], 64, 64, 4
        $region20: #{tpu_custom_call.1} parent=11 // pred_fallthru
          _
        // Predicated region
        $region21: #{tpu_custom_call.1} parent=11 // pred_check
          %p218 = pneg %p109
        $region22: #{tpu_custom_call.1} parent=11 // pred_check_branch
          %220 = sbr.rel (%p218) target = $region24
        $region23: #{tpu_custom_call.1} parent=11 // pred_region
          _
        $region24: #{tpu_custom_call.1} parent=11 // pred_fallthru
          _
        // Predicated region
        $region25: #{tpu_custom_call.1} parent=11 // pred_check
          %p221 = pneg %p130
        $region26: #{tpu_custom_call.1} parent=11 // pred_check_branch
          %223 = sbr.rel (%p221) target = $region28
        $region27: #{tpu_custom_call.1} parent=11 // pred_region
          %s225 = ssub.s32 1024, 1024
          %226 = vsyncadd [#allocation9], %s225
          %s227 = sshll.u32 [#allocation8], 4
          %s228 = int_to_ptr.vmem [resolvable:$true] %s227
          %233 = dma.hbm_to_vmem [thread:$0]  %s4, 1024, %s228, [#allocation9], 64, 64, 4
        $region28: #{tpu_custom_call.1} parent=11 // pred_fallthru
          _
        // Predicated region
        $region29: #{tpu_custom_call.1} parent=11 // pred_check
          %p234 = pneg %p151
        $region30: #{tpu_custom_call.1} parent=11 // pred_check_branch
          %236 = sbr.rel (%p234) target = $region32
        $region31: #{tpu_custom_call.1} parent=11 // pred_region
          _
        $region32: #{tpu_custom_call.1} parent=11 // pred_fallthru
          _
      $region12: #{tpu_custom_call.1} parent=5 // pred_fallthru
        _
      %p237 = scmp.lt.s32.totalorder %s20, 2
      // Predicated region
      $region33: #{tpu_custom_call.1} parent=5 // pred_check
        %p238 = pneg %p237
      $region34: #{tpu_custom_call.1} parent=5 // pred_check_branch
        %240 = sbr.rel (%p238) target = $region36
      $region35: #{tpu_custom_call.1} parent=5 // pred_region
        // Predicated region
        $region37: #{tpu_custom_call.1} parent=35 // pred_check
          %p241 = pneg %p40
        $region38: #{tpu_custom_call.1} parent=35 // pred_check_branch
          %243 = sbr.rel (%p241) target = $region40
        $region39: #{tpu_custom_call.1} parent=35 // pred_region
          %s244 = sand.u32 %s30, 1
          %s245 = scalar_lea.sflag [#allocation3], %s244
          %s246 = sand.u32 %s30, 1
          %s247 = smul.addr %s246, 8
          %s248 = scalar_lea.vmem [#allocation2], %s247
          %s250 = ssub.s32 128, 128
          %251 = vsyncadd %s245, %s250
          %s252 = smul.addr %s20, 128
          %s253 = scalar_lea.hbm %s0, %s252
          %s255 = sshll.u32 %s248, 4
          %s256 = int_to_ptr.vmem [resolvable:$true] %s255
          %258 = dma.hbm_to_vmem [thread:$0]  %s253, 128, %s256, %s245
        $region40: #{tpu_custom_call.1} parent=35 // pred_fallthru
          _
      $region36: #{tpu_custom_call.1} parent=5 // pred_fallthru
        _
      %p259 = scmp.le.s32.totalorder 1, %s20
      %p260 = scmp.lt.s32.totalorder %s20, 3
      %p261 = pnand %p259, %p260
      %p262 = pneg %p261
      // Predicated region
      $region41: #{tpu_custom_call.1} parent=5 // pred_check
        _
      $region42: #{tpu_custom_call.1} parent=5 // pred_check_branch
        %264 = sbr.rel (%p261) target = $region44
      $region43: #{tpu_custom_call.1} parent=5 // pred_region
        %s265 = ssub.s32 %s20, 1
        %s266 = sand.u32 %s33, 1
        %s267 = scalar_lea.sflag [#allocation3], %s266
        %s268 = sand.u32 %s33, 1
        %s269 = smul.addr %s268, 8
        %s270 = scalar_lea.vmem [#allocation2], %s269
        // Predicated region
        $region45: #{tpu_custom_call.1} parent=43 // pred_check
          %p271 = pneg %p46
        $region46: #{tpu_custom_call.1} parent=43 // pred_check_branch
          %273 = sbr.rel (%p271) target = $region48
        $region47: #{tpu_custom_call.1} parent=43 // pred_region
          %274 = dma.done %s267, 128
        $region48: #{tpu_custom_call.1} parent=43 // pred_fallthru
          _
        // Predicated region
        $region49: #{tpu_custom_call.1} parent=43 // pred_check
          %p275 = pneg %p67
        $region50: #{tpu_custom_call.1} parent=43 // pred_check_branch
          %277 = sbr.rel (%p275) target = $region52
        $region51: #{tpu_custom_call.1} parent=43 // pred_region
          %278 = dma.done [#allocation6], 1024
        $region52: #{tpu_custom_call.1} parent=43 // pred_fallthru
          _
        // Predicated region
        $region53: #{tpu_custom_call.1} parent=43 // pred_check
          %p279 = pneg %p88
        $region54: #{tpu_custom_call.1} parent=43 // pred_check_branch
          %281 = sbr.rel (%p279) target = $region56
        $region55: #{tpu_custom_call.1} parent=43 // pred_region
          %282 = dma.done [#allocation6], 1024
        $region56: #{tpu_custom_call.1} parent=43 // pred_fallthru
          _
        // Predicated region
        $region57: #{tpu_custom_call.1} parent=43 // pred_check
          %p283 = pneg %p130
        $region58: #{tpu_custom_call.1} parent=43 // pred_check_branch
          %285 = sbr.rel (%p283) target = $region60
        $region59: #{tpu_custom_call.1} parent=43 // pred_region
          %286 = dma.done [#allocation9], 1024
        $region60: #{tpu_custom_call.1} parent=43 // pred_fallthru
          _
        %s287 = sand.u32 %s33, 1
        %s288 = scalar_lea.sflag [#allocation3], %s287
        %s289 = sand.u32 %s33, 1
        %s290 = smul.addr %s289, 8
        %s291 = scalar_lea.vmem [#allocation2], %s290
        %p292 = pneg %p46
        %p293 = pneg %p43
        %p294 = pneg %p67
        %p295 = pneg %p64
        %p296 = pneg %p88
        %p297 = pneg %p85
        %p298 = pneg %p109
        %p299 = pneg %p106
        %p300 = pneg %p130
        %p301 = pneg %p127
        %p302 = pneg %p151
        %p303 = pneg %p148
        %p304 = pneg %p177
        %p305 = pneg %p174
        %s306 = sand.u32 %s164, 1
        %s307 = scalar_lea.sflag [#allocation4], %s306
        %s308 = sand.u32 %s164, 1
        %s309 = smul.addr %s308, 8
        %s310 = scalar_lea.vmem [#allocation10], %s309
        %v312 = vlaneseq
        %v313 = vand.u32 %v312, 127
        %v314 = vld [vmem:[%s270] sm:$0xff]
        %315 = vset.pattern.permute.xlu0 0
        %316 = vperm.xlu0 %315, %v314
        %v317 = vpop.permute.xlu0 %316
        %vm318 = vcmp.eq.s32.totalorder %v317, %v313
        %v319 = vsel %vm318, 1, 0
        %320 = vset.pattern.permute.xlu0 1
        %321 = vperm.xlu0 %320, %v314
        %v322 = vpop.permute.xlu0 %321
        %vm323 = vcmp.eq.s32.totalorder %v322, %v313
        %v324 = vsel %vm323, 1, 0
        %v325 = vadd.s32 %v319, %v324
        %326 = vset.pattern.permute.xlu0 2
        %327 = vperm.xlu0 %326, %v314
        %v328 = vpop.permute.xlu0 %327
        %vm329 = vcmp.eq.s32.totalorder %v328, %v313
        %v330 = vsel %vm329, 1, 0
        %v331 = vadd.s32 %v325, %v330
        %332 = vset.pattern.permute.xlu0 3
        %333 = vperm.xlu0 %332, %v314
        %v334 = vpop.permute.xlu0 %333
        %vm335 = vcmp.eq.s32.totalorder %v334, %v313
        %v336 = vsel %vm335, 1, 0
        %v337 = vadd.s32 %v331, %v336
        %338 = vset.pattern.permute.xlu0 4
        %339 = vperm.xlu0 %338, %v314
        %v340 = vpop.permute.xlu0 %339
        %vm341 = vcmp.eq.s32.totalorder %v340, %v313
        %v342 = vsel %vm341, 1, 0
        %v343 = vadd.s32 %v337, %v342
        %344 = vset.pattern.permute.xlu0 5
        %345 = vperm.xlu0 %344, %v314
        %v346 = vpop.permute.xlu0 %345
        %vm347 = vcmp.eq.s32.totalorder %v346, %v313
        %v348 = vsel %vm347, 1, 0
        %v349 = vadd.s32 %v343, %v348
        %350 = vset.pattern.permute.xlu0 6
        %351 = vperm.xlu0 %350, %v314
        %v352 = vpop.permute.xlu0 %351
        %vm353 = vcmp.eq.s32.totalorder %v352, %v313
        %v354 = vsel %vm353, 1, 0
        %v355 = vadd.s32 %v349, %v354
        %356 = vset.pattern.permute.xlu0 7
        %357 = vperm.xlu0 %356, %v314
        %v358 = vpop.permute.xlu0 %357
        %vm359 = vcmp.eq.s32.totalorder %v358, %v313
        %v360 = vsel %vm359, 1, 0
        %v361 = vadd.s32 %v355, %v360
        %362 = vset.pattern.permute.xlu0 8
        %363 = vperm.xlu0 %362, %v314
        %v364 = vpop.permute.xlu0 %363
        %vm365 = vcmp.eq.s32.totalorder %v364, %v313
        %v366 = vsel %vm365, 1, 0
        %v367 = vadd.s32 %v361, %v366
        %368 = vset.pattern.permute.xlu0 9
        %369 = vperm.xlu0 %368, %v314
        %v370 = vpop.permute.xlu0 %369
        %vm371 = vcmp.eq.s32.totalorder %v370, %v313
        %v372 = vsel %vm371, 1, 0
        %v373 = vadd.s32 %v367, %v372
        %374 = vset.pattern.permute.xlu0 10
        %375 = vperm.xlu0 %374, %v314
        %v376 = vpop.permute.xlu0 %375
        %vm377 = vcmp.eq.s32.totalorder %v376, %v313
        %v378 = vsel %vm377, 1, 0
        %v379 = vadd.s32 %v373, %v378
        %380 = vset.pattern.permute.xlu0 11
        %381 = vperm.xlu0 %380, %v314
        %v382 = vpop.permute.xlu0 %381
        %vm383 = vcmp.eq.s32.totalorder %v382, %v313
        %v384 = vsel %vm383, 1, 0
        %v385 = vadd.s32 %v379, %v384
        %386 = vset.pattern.permute.xlu0 12
        %387 = vperm.xlu0 %386, %v314
        %v388 = vpop.permute.xlu0 %387
        %vm389 = vcmp.eq.s32.totalorder %v388, %v313
        %v390 = vsel %vm389, 1, 0
        %v391 = vadd.s32 %v385, %v390
        %392 = vset.pattern.permute.xlu0 13
        %393 = vperm.xlu0 %392, %v314
        %v394 = vpop.permute.xlu0 %393
        %vm395 = vcmp.eq.s32.totalorder %v394, %v313
        %v396 = vsel %vm395, 1, 0
        %v397 = vadd.s32 %v391, %v396
        %398 = vset.pattern.permute.xlu0 14
        %399 = vperm.xlu0 %398, %v314
        %v400 = vpop.permute.xlu0 %399
        %vm401 = vcmp.eq.s32.totalorder %v400, %v313
        %v402 = vsel %vm401, 1, 0
        %v403 = vadd.s32 %v397, %v402
        %404 = vset.pattern.permute.xlu0 15
        %405 = vperm.xlu0 %404, %v314
        %v406 = vpop.permute.xlu0 %405
        %vm407 = vcmp.eq.s32.totalorder %v406, %v313
        %v408 = vsel %vm407, 1, 0
        %v409 = vadd.s32 %v403, %v408
        %v410 = vcvt.s32.f32 %v409
        %v411 = vpack.c.bf16 %v410, %v410
        %v412 = vld [vmem:[#allocation5] sm:$0xf]
        %v413 = vld [vmem:[#allocation5 + $0x4] sm:$0xf]
        %v414 = vld [vmem:[#allocation5 + $0x8] sm:$0xf]
        %v415 = vld [vmem:[#allocation5 + $0xc] sm:$0xf]
        %v416 = vld [vmem:[#allocation5 + $0x10] sm:$0xf]
        %v417 = vld [vmem:[#allocation5 + $0x14] sm:$0xf]
        %v418 = vld [vmem:[#allocation5 + $0x18] sm:$0xf]
        %v419 = vld [vmem:[#allocation5 + $0x1c] sm:$0xf]
        %v420 = vld [vmem:[#allocation5 + $0x20] sm:$0xf]
        %v421 = vld [vmem:[#allocation5 + $0x24] sm:$0xf]
        %v422 = vld [vmem:[#allocation5 + $0x28] sm:$0xf]
        %v423 = vld [vmem:[#allocation5 + $0x2c] sm:$0xf]
        %v424 = vld [vmem:[#allocation5 + $0x30] sm:$0xf]
        %v425 = vld [vmem:[#allocation5 + $0x34] sm:$0xf]
        %v426 = vld [vmem:[#allocation5 + $0x38] sm:$0xf]
        %v427 = vld [vmem:[#allocation5 + $0x3c] sm:$0xf]
        %v444 = vunpack.c.l.b16 %v412
        %v445 = vunpack.c.l.b16 %v413
        %v446 = vunpack.c.l.b16 %v414
        %v447 = vunpack.c.l.b16 %v415
        %v448 = vunpack.c.l.b16 %v416
        %v449 = vunpack.c.l.b16 %v417
        %v450 = vunpack.c.l.b16 %v418
        %v451 = vunpack.c.l.b16 %v419
        %v452 = vunpack.c.l.b16 %v420
        %v453 = vunpack.c.l.b16 %v421
        %v454 = vunpack.c.l.b16 %v422
        %v455 = vunpack.c.l.b16 %v423
        %v456 = vunpack.c.l.b16 %v424
        %v457 = vunpack.c.l.b16 %v425
        %v458 = vunpack.c.l.b16 %v426
        %v459 = vunpack.c.l.b16 %v427
        %v460 = vpack.c.b16 %v445, %v444
        %v461 = vpack.c.b16 %v447, %v446
        %v462 = vpack.c.b16 %v449, %v448
        %v463 = vpack.c.b16 %v451, %v450
        %v464 = vpack.c.b16 %v453, %v452
        %v465 = vpack.c.b16 %v455, %v454
        %v466 = vpack.c.b16 %v457, %v456
        %v467 = vpack.c.b16 %v459, %v458
        %476 = vmatprep.subr.bf16.mxu0 0
        %477 = vmatpush1.bf16.msra.mxu0 %v460
        %478 = vmatprep.subr.bf16.mxu0 0
        %479 = vmatpush1.bf16.msra.mxu0 %v461
        %480 = vmatprep.subr.bf16.mxu0 0
        %481 = vmatpush1.bf16.msra.mxu0 %v462
        %482 = vmatprep.subr.bf16.mxu0 0
        %483 = vmatpush1.bf16.msra.mxu0 %v463
        %484 = vmatprep.subr.bf16.mxu0 0
        %485 = vmatpush1.bf16.msra.mxu0 %v464
        %486 = vmatprep.subr.bf16.mxu0 0
        %487 = vmatpush1.bf16.msra.mxu0 %v465
        %488 = vmatprep.subr.bf16.mxu0 0
        %489 = vmatpush1.bf16.msra.mxu0 %v466
        %490 = vmatprep.subr.bf16.mxu0 0
        %491 = vmatpush1.bf16.msra.mxu0 %v467
        %492 = vmatprep.subr.bf16.mxu0 0
        %493 = vmatpush1.bf16.msra.mxu0 0
        %494 = vmatprep.subr.bf16.mxu0 0
        %495 = vmatpush1.bf16.msra.mxu0 0
        %496 = vmatprep.subr.bf16.mxu0 0
        %497 = vmatpush1.bf16.msra.mxu0 0
        %498 = vmatprep.subr.bf16.mxu0 0
        %499 = vmatpush1.bf16.msra.mxu0 0
        %500 = vmatprep.subr.bf16.mxu0 0
        %501 = vmatpush1.bf16.msra.mxu0 0
        %502 = vmatprep.subr.bf16.mxu0 0
        %503 = vmatpush1.bf16.msra.mxu0 0
        %504 = vmatprep.subr.bf16.mxu0 0
        %505 = vmatpush1.bf16.msra.mxu0 0
        %506 = vmatprep.subr.bf16.mxu0 0
        %507 = vmatpush1.bf16.msra.mxu0 0
        %508 = vmatprep.mubr.bf16.mxu0 0
        %509 = vmatmul.mubr.bf16.gmra.mrb[0].mxu0 %v411
        %v510 = vpop.f32.mrb[0].mxu0
        %v511 = vadd.f32 0.0, %v510
        %v512 = vpop.f32.mrb[0].mxu0
        %v513 = vpop.f32.mrb[0].mxu0
        %v514 = vpop.f32.mrb[0].mxu0
        %515 = vdwg.mxu0
        %v516 = vpack.c.bf16 %v511, %v511
        %v517 = vld [vmem:[#allocation7] sm:$0xf]
        %v518 = vld [vmem:[#allocation7 + $0x4] sm:$0xf]
        %v519 = vld [vmem:[#allocation7 + $0x8] sm:$0xf]
        %v520 = vld [vmem:[#allocation7 + $0xc] sm:$0xf]
        %v521 = vld [vmem:[#allocation7 + $0x10] sm:$0xf]
        %v522 = vld [vmem:[#allocation7 + $0x14] sm:$0xf]
        %v523 = vld [vmem:[#allocation7 + $0x18] sm:$0xf]
        %v524 = vld [vmem:[#allocation7 + $0x1c] sm:$0xf]
        %v525 = vld [vmem:[#allocation7 + $0x20] sm:$0xf]
        %v526 = vld [vmem:[#allocation7 + $0x24] sm:$0xf]
        %v527 = vld [vmem:[#allocation7 + $0x28] sm:$0xf]
        %v528 = vld [vmem:[#allocation7 + $0x2c] sm:$0xf]
        %v529 = vld [vmem:[#allocation7 + $0x30] sm:$0xf]
        %v530 = vld [vmem:[#allocation7 + $0x34] sm:$0xf]
        %v531 = vld [vmem:[#allocation7 + $0x38] sm:$0xf]
        %v532 = vld [vmem:[#allocation7 + $0x3c] sm:$0xf]
        %v533 = vld [vmem:[%s3] sm:$0x1]
        %v535 = vlaneseq
        %v536 = vshrl.u32 %v535, 7
        %v537 = vsub.s32 0, %v536
        %v538 = vrot.slane %v533, %v537
        %v556 = vunpack.c.l.b16 %v517
        %v557 = vunpack.c.l.b16 %v518
        %v558 = vunpack.c.l.b16 %v519
        %v559 = vunpack.c.l.b16 %v520
        %v560 = vunpack.c.l.b16 %v521
        %v561 = vunpack.c.l.b16 %v522
        %v562 = vunpack.c.l.b16 %v523
        %v563 = vunpack.c.l.b16 %v524
        %v564 = vunpack.c.l.b16 %v525
        %v565 = vunpack.c.l.b16 %v526
        %v566 = vunpack.c.l.b16 %v527
        %v567 = vunpack.c.l.b16 %v528
        %v568 = vunpack.c.l.b16 %v529
        %v569 = vunpack.c.l.b16 %v530
        %v570 = vunpack.c.l.b16 %v531
        %v571 = vunpack.c.l.b16 %v532
        %v572 = vpack.c.b16 %v557, %v556
        %v573 = vpack.c.b16 %v559, %v558
        %v574 = vpack.c.b16 %v561, %v560
        %v575 = vpack.c.b16 %v563, %v562
        %v576 = vpack.c.b16 %v565, %v564
        %v577 = vpack.c.b16 %v567, %v566
        %v578 = vpack.c.b16 %v569, %v568
        %v579 = vpack.c.b16 %v571, %v570
        %588 = vmatprep.subr.bf16.mxu0 0
        %589 = vmatpush1.bf16.msra.mxu0 %v572
        %590 = vmatprep.subr.bf16.mxu0 0
        %591 = vmatpush1.bf16.msra.mxu0 %v573
        %592 = vmatprep.subr.bf16.mxu0 0
        %593 = vmatpush1.bf16.msra.mxu0 %v574
        %594 = vmatprep.subr.bf16.mxu0 0
        %595 = vmatpush1.bf16.msra.mxu0 %v575
        %596 = vmatprep.subr.bf16.mxu0 0
        %597 = vmatpush1.bf16.msra.mxu0 %v576
        %598 = vmatprep.subr.bf16.mxu0 0
        %599 = vmatpush1.bf16.msra.mxu0 %v577
        %600 = vmatprep.subr.bf16.mxu0 0
        %601 = vmatpush1.bf16.msra.mxu0 %v578
        %602 = vmatprep.subr.bf16.mxu0 0
        %603 = vmatpush1.bf16.msra.mxu0 %v579
        %604 = vmatprep.subr.bf16.mxu0 0
        %605 = vmatpush1.bf16.msra.mxu0 0
        %606 = vmatprep.subr.bf16.mxu0 0
        %607 = vmatpush1.bf16.msra.mxu0 0
        %608 = vmatprep.subr.bf16.mxu0 0
        %609 = vmatpush1.bf16.msra.mxu0 0
        %610 = vmatprep.subr.bf16.mxu0 0
        %611 = vmatpush1.bf16.msra.mxu0 0
        %612 = vmatprep.subr.bf16.mxu0 0
        %613 = vmatpush1.bf16.msra.mxu0 0
        %614 = vmatprep.subr.bf16.mxu0 0
        %615 = vmatpush1.bf16.msra.mxu0 0
        %616 = vmatprep.subr.bf16.mxu0 0
        %617 = vmatpush1.bf16.msra.mxu0 0
        %618 = vmatprep.subr.bf16.mxu0 0
        %619 = vmatpush1.bf16.msra.mxu0 0
        %620 = vmatprep.mubr.bf16.mxu0 0
        %621 = vmatmul.mubr.bf16.gmra.mrb[0].mxu0 %v516
        %v622 = vpop.f32.mrb[0].mxu0
        %v623 = vadd.f32 %v538, %v622
        %v624 = vpop.f32.mrb[0].mxu0
        %v625 = vpop.f32.mrb[0].mxu0
        %v626 = vpop.f32.mrb[0].mxu0
        %627 = vdwg.mxu0
        %v628 = vmax.f32 %v623, 0.0
        %v629 = vpack.c.bf16 %v628, %v628
        %v630 = vld [vmem:[#allocation8] sm:$0xf]
        %v631 = vld [vmem:[#allocation8 + $0x4] sm:$0xf]
        %v632 = vld [vmem:[#allocation8 + $0x8] sm:$0xf]
        %v633 = vld [vmem:[#allocation8 + $0xc] sm:$0xf]
        %v634 = vld [vmem:[#allocation8 + $0x10] sm:$0xf]
        %v635 = vld [vmem:[#allocation8 + $0x14] sm:$0xf]
        %v636 = vld [vmem:[#allocation8 + $0x18] sm:$0xf]
        %v637 = vld [vmem:[#allocation8 + $0x1c] sm:$0xf]
        %v638 = vld [vmem:[#allocation8 + $0x20] sm:$0xf]
        %v639 = vld [vmem:[#allocation8 + $0x24] sm:$0xf]
        %v640 = vld [vmem:[#allocation8 + $0x28] sm:$0xf]
        %v641 = vld [vmem:[#allocation8 + $0x2c] sm:$0xf]
        %v642 = vld [vmem:[#allocation8 + $0x30] sm:$0xf]
        %v643 = vld [vmem:[#allocation8 + $0x34] sm:$0xf]
        %v644 = vld [vmem:[#allocation8 + $0x38] sm:$0xf]
        %v645 = vld [vmem:[#allocation8 + $0x3c] sm:$0xf]
        %v646 = vld [vmem:[%s5] sm:$0x1]
        %v648 = vlaneseq
        %v649 = vshrl.u32 %v648, 7
        %v650 = vsub.s32 0, %v649
        %v651 = vrot.slane %v646, %v650
        %v669 = vunpack.c.l.b16 %v630
        %v670 = vunpack.c.l.b16 %v631
        %v671 = vunpack.c.l.b16 %v632
        %v672 = vunpack.c.l.b16 %v633
        %v673 = vunpack.c.l.b16 %v634
        %v674 = vunpack.c.l.b16 %v635
        %v675 = vunpack.c.l.b16 %v636
        %v676 = vunpack.c.l.b16 %v637
        %v677 = vunpack.c.l.b16 %v638
        %v678 = vunpack.c.l.b16 %v639
        %v679 = vunpack.c.l.b16 %v640
        %v680 = vunpack.c.l.b16 %v641
        %v681 = vunpack.c.l.b16 %v642
        %v682 = vunpack.c.l.b16 %v643
        %v683 = vunpack.c.l.b16 %v644
        %v684 = vunpack.c.l.b16 %v645
        %v685 = vpack.c.b16 %v670, %v669
        %v686 = vpack.c.b16 %v672, %v671
        %v687 = vpack.c.b16 %v674, %v673
        %v688 = vpack.c.b16 %v676, %v675
        %v689 = vpack.c.b16 %v678, %v677
        %v690 = vpack.c.b16 %v680, %v679
        %v691 = vpack.c.b16 %v682, %v681
        %v692 = vpack.c.b16 %v684, %v683
        %701 = vmatprep.subr.bf16.mxu0 0
        %702 = vmatpush1.bf16.msra.mxu0 %v685
        %703 = vmatprep.subr.bf16.mxu0 0
        %704 = vmatpush1.bf16.msra.mxu0 %v686
        %705 = vmatprep.subr.bf16.mxu0 0
        %706 = vmatpush1.bf16.msra.mxu0 %v687
        %707 = vmatprep.subr.bf16.mxu0 0
        %708 = vmatpush1.bf16.msra.mxu0 %v688
        %709 = vmatprep.subr.bf16.mxu0 0
        %710 = vmatpush1.bf16.msra.mxu0 %v689
        %711 = vmatprep.subr.bf16.mxu0 0
        %712 = vmatpush1.bf16.msra.mxu0 %v690
        %713 = vmatprep.subr.bf16.mxu0 0
        %714 = vmatpush1.bf16.msra.mxu0 %v691
        %715 = vmatprep.subr.bf16.mxu0 0
        %716 = vmatpush1.bf16.msra.mxu0 %v692
        %717 = vmatprep.subr.bf16.mxu0 0
        %718 = vmatpush1.bf16.msra.mxu0 0
        %719 = vmatprep.subr.bf16.mxu0 0
        %720 = vmatpush1.bf16.msra.mxu0 0
        %721 = vmatprep.subr.bf16.mxu0 0
        %722 = vmatpush1.bf16.msra.mxu0 0
        %723 = vmatprep.subr.bf16.mxu0 0
        %724 = vmatpush1.bf16.msra.mxu0 0
        %725 = vmatprep.subr.bf16.mxu0 0
        %726 = vmatpush1.bf16.msra.mxu0 0
        %727 = vmatprep.subr.bf16.mxu0 0
        %728 = vmatpush1.bf16.msra.mxu0 0
        %729 = vmatprep.subr.bf16.mxu0 0
        %730 = vmatpush1.bf16.msra.mxu0 0
        %731 = vmatprep.subr.bf16.mxu0 0
        %732 = vmatpush1.bf16.msra.mxu0 0
        %733 = vmatprep.mubr.bf16.mxu0 0
        %734 = vmatmul.mubr.bf16.gmra.mrb[0].mxu0 %v629
        %v735 = vpop.f32.mrb[0].mxu0
        %v736 = vadd.f32 %v651, %v735
        %v737 = vpop.f32.mrb[0].mxu0
        %v738 = vpop.f32.mrb[0].mxu0
        %v739 = vpop.f32.mrb[0].mxu0
        %740 = vdwg.mxu0
        %741 = vst [vmem:[%s310] sm:$0xff] %v736
        %s742 = sand.u32 %s164, 1
        %s743 = scalar_lea.sflag [#allocation4], %s742
        %s744 = sand.u32 %s164, 1
        %s745 = smul.addr %s744, 8
        %s746 = scalar_lea.vmem [#allocation10], %s745
        // Predicated region
        $region61: #{tpu_custom_call.1} parent=43 // pred_check
          %p747 = pneg %p174
        $region62: #{tpu_custom_call.1} parent=43 // pred_check_branch
          %749 = sbr.rel (%p747) target = $region64
        $region63: #{tpu_custom_call.1} parent=43 // pred_region
          %s751 = ssub.s32 128, 128
          %752 = vsyncadd %s743, %s751
          %s753 = smul.addr %s25, 128
          %s754 = scalar_lea.hbm %s6, %s753
          %s756 = sshll.u32 %s746, 4
          %s757 = int_to_ptr.vmem [resolvable:$true] %s756
          %759 = dma.vmem_to_hbm [thread:$0]  %s757, 128, %s754, %s743
        $region64: #{tpu_custom_call.1} parent=43 // pred_fallthru
          _
      $region44: #{tpu_custom_call.1} parent=5 // pred_fallthru
        _
      %p760 = scmp.le.s32.totalorder 2, %s20
      // Predicated region
      $region65: #{tpu_custom_call.1} parent=5 // pred_check
        %p761 = pneg %p760
      $region66: #{tpu_custom_call.1} parent=5 // pred_check_branch
        %763 = sbr.rel (%p761) target = $region68
      $region67: #{tpu_custom_call.1} parent=5 // pred_region
        %s764 = ssub.s32 %s20, 2
        // Predicated region
        $region69: #{tpu_custom_call.1} parent=67 // pred_check
          %p765 = pneg %p180
        $region70: #{tpu_custom_call.1} parent=67 // pred_check_branch
          %767 = sbr.rel (%p765) target = $region72
        $region71: #{tpu_custom_call.1} parent=67 // pred_region
          %s768 = sand.u32 %s165, 1
          %s769 = scalar_lea.sflag [#allocation4], %s768
          %s770 = sand.u32 %s165, 1
          %s771 = smul.addr %s770, 8
          %s772 = scalar_lea.vmem [#allocation10], %s771
          %773 = dma.done %s769, 128
        $region72: #{tpu_custom_call.1} parent=67 // pred_fallthru
          _
      $region68: #{tpu_custom_call.1} parent=5 // pred_fallthru
        _
    $region6: #{tpu_custom_call.1} parent=1 // loop_footer
      %s24 = sadd.s32 1, %s20
    $region7: #{tpu_custom_call.1} parent=1 // loop_footer_branch
      %19 = sbr.rel target = $region3
    $region8: #{tpu_custom_call.1} parent=1 // loop_exit
      _
    %774 = vsyncpa [#allocation3], 1
    %s775 = scalar_lea.sflag [#allocation3], 1
    %776 = vsyncpa %s775, 1
    %777 = vsyncpa [#allocation6], 1
    %778 = vsyncpa [#allocation9], 1
    %779 = vsyncpa [#allocation4], 1
    %s780 = scalar_lea.sflag [#allocation4], 1
    %781 = vsyncpa %s780, 1

</llo_original>
